<compile_context>
chip_gen: v7x
topology: tpu7x:2x2x1
jax: 0.10.0
libtpu: 0.0.40
codegen_flags: <defaults>
</compile_context>

<pallas_src>
import jax
import jax.numpy as jnp
from jax.experimental import pallas as pl
from jax.experimental.pallas import tpu as pltpu


# ----------------------------------------------------------------------------
# Shared math helper (used both inside the kernel and in the pure-JAX ref)
# ----------------------------------------------------------------------------
def _layernorm(x, w, b, eps=1e-5):
    mu = jnp.mean(x, axis=-1, keepdims=True)
    var = jnp.mean((x - mu) ** 2, axis=-1, keepdims=True)
    return (x - mu) * jax.lax.rsqrt(var + eps) * w + b


# ----------------------------------------------------------------------------
# Fused Pallas kernel: grid=(num_layers,); one encoder layer per grid step,
# mapper Linear + (ep_len, E) output written on the last step.
# ----------------------------------------------------------------------------
def mapping_kernel(x_ref,                       # (1, E)  f32   (constant block)
                   wv_ref, bv_ref,              # (E, E) bf16 / (1, E) f32  — V slice of fused QKV
                   wo_ref,                      # (E, E) bf16
                   vec_ref,                     # (8, E) f32: [bo, ln1_w, ln1_b, b2, ln2_w, ln2_b, 0, 0]
                   w1_ref, b1_ref,              # (E, FF) bf16 / (1, FF) f32
                   w2_ref,                      # (FF, E) bf16
                   map_w_ref, map_b_ref,        # (E, ep_len*E) bf16 / (1, ep_len*E) f32
                   o_ref,                       # (ep_len, E) f32
                   x_scr):                      # VMEM scratch (1, E) f32 — resident activation
    l = pl.program_id(0)
    E = x_ref.shape[-1]

    @pl.when(l == 0)
    def _():
        x_scr[...] = x_ref[...]

    x = x_scr[...]                               # (1, E) f32

    vec = vec_ref[...]                           # (8, E) f32
    bo, g1, c1 = vec[0:1], vec[1:2], vec[2:3]
    b2, g2, c2 = vec[3:4], vec[4:5], vec[5:6]

    # --- self-attention, seq_len == 1 ---------------------------------------
    # softmax over a single key is identically 1, so the attention context is
    # exactly the V projection; Q/K matmuls, scores and softmax are skipped.
    v = jnp.dot(x.astype(jnp.bfloat16), wv_ref[...],
                preferred_element_type=jnp.float32) + bv_ref[...]
    attn = jnp.dot(v.astype(jnp.bfloat16), wo_ref[...],
                   preferred_element_type=jnp.float32) + bo

    # --- residual + LayerNorm1 (norm_first=False, post-norm) -----------------
    h1 = _layernorm(x + attn, g1, c1)

    # --- feed-forward (ReLU) + residual + LayerNorm2 --------------------------
    f = jnp.dot(h1.astype(jnp.bfloat16), w1_ref[...],
                preferred_element_type=jnp.float32) + b1_ref[...]
    f = jnp.maximum(f, 0.0)
    f = jnp.dot(f.astype(jnp.bfloat16), w2_ref[...],
                preferred_element_type=jnp.float32) + b2
    h2 = _layernorm(h1 + f, g2, c2)

    x_scr[...] = h2

    # --- last layer: mapper Linear + view to (ep_len, E) ----------------------
    @pl.when(l == pl.num_programs(0) - 1)
    def _():
        y = jnp.dot(h2.astype(jnp.bfloat16), map_w_ref[...],
                    preferred_element_type=jnp.float32) + map_b_ref[...]   # (1, ep_len*E)
        ep = o_ref.shape[0]
        for p in range(ep):                      # lane-dense (1, E) row writes
            o_ref[p:p + 1, :] = y[:, p * E:(p + 1) * E]


# ----------------------------------------------------------------------------
# Parameter construction (deterministic; mirrors Mapping.init_weights shapes,
# with stacked per-layer weights, fused QKV and bf16 matmul weights)
# ----------------------------------------------------------------------------
def make_mapping_params(key, *, embed_size, n_heads, num_layers,
                        forward_expansion, ep_len):
    E = embed_size
    FF = E * forward_expansion
    keys = jax.random.split(key, num_layers * 4 + 1)

    def kaiming(k, shape, fan_in):
        return (2.0 / fan_in) ** 0.5 * jax.random.normal(k, shape, jnp.float32)

    wqkv, wo, w1, w2 = [], [], [], []
    for l in range(num_layers):
        k0, k1, k2, k3 = keys[4 * l: 4 * l + 4]
        # fused in_proj  (x @ W layout), deterministic normal stand-in for xavier
        wqkv.append((1.0 / E) ** 0.5 * jax.random.normal(k0, (E, 3 * E), jnp.float32))
        wo.append(kaiming(k1, (E, E), E))
        w1.append(kaiming(k2, (E, FF), E))
        w2.append(kaiming(k3, (FF, E), FF))

    # packed per-layer vectors: rows = [bo, ln1_w, ln1_b, b2, ln2_w, ln2_b, pad, pad]
    vec = jnp.zeros((num_layers, 8, E), jnp.float32)
    vec = vec.at[:, 1, :].set(1.0).at[:, 4, :].set(1.0)

    params = dict(
        wqkv=jnp.stack(wqkv).astype(jnp.bfloat16),            # (L, E, 3E)
        bqkv=jnp.zeros((num_layers, 1, 3 * E), jnp.float32),   # (L, 1, 3E)
        wo=jnp.stack(wo).astype(jnp.bfloat16),                 # (L, E, E)
        vec=vec,                                               # (L, 8, E)
        w1=jnp.stack(w1).astype(jnp.bfloat16),                 # (L, E, FF)
        b1=jnp.zeros((num_layers, 1, FF), jnp.float32),        # (L, 1, FF)
        w2=jnp.stack(w2).astype(jnp.bfloat16),                 # (L, FF, E)
        map_w=kaiming(keys[-1], (E, ep_len * E), E).astype(jnp.bfloat16),
        map_b=jnp.zeros((1, ep_len * E), jnp.float32),
        ep_len=ep_len, embed_size=E, n_heads=n_heads,
        forward_expansion=forward_expansion,
    )
    return params


# ----------------------------------------------------------------------------
# Net.forward (Pallas portion): img_embedded (1, E) -> img_mapped (ep_len, E)
# ----------------------------------------------------------------------------
def net_mapping_forward(img_embedded, params):
    x = img_embedded.astype(jnp.float32)
    S, E = x.shape
    # Inference path of Mapping (train_mode=False view to (ep_len, E)) requires
    # an unbatched length-1 sequence, exactly what the CLIP pooler output is.
    assert S == 1, "Net.forward inference path expects img_embedded of shape (1, embed_size)"

    ep_len = int(params["ep_len"])
    FF = params["w1"].shape[-1]
    L = params["wqkv"].shape[0]
    EPE = ep_len * E

    grid_spec = pltpu.PrefetchScalarGridSpec(
        num_scalar_prefetch=0,
        grid=(L,),
        in_specs=[
            pl.BlockSpec((S, E), lambda l: (0, 0)),                 # x (resident)
            # fused QKV weight: only the V-columns block (lane-block 2) is DMA'd
            pl.BlockSpec((None, E, E), lambda l: (l, 0, 2)),        # wqkv -> V slice
            pl.BlockSpec((None, 1, E), lambda l: (l, 0, 2)),        # bqkv -> V slice
            pl.BlockSpec((None, E, E), lambda l: (l, 0, 0)),        # wo
            pl.BlockSpec((None, 8, E), lambda l: (l, 0, 0)),        # packed vectors
            pl.BlockSpec((None, E, FF), lambda l: (l, 0, 0)),       # w1
            pl.BlockSpec((None, 1, FF), lambda l: (l, 0, 0)),       # b1
            pl.BlockSpec((None, FF, E), lambda l: (l, 0, 0)),       # w2
            pl.BlockSpec((E, EPE), lambda l: (0, 0)),               # mapper W (resident)
            pl.BlockSpec((1, EPE), lambda l: (0, 0)),               # mapper b (resident)
        ],
        out_specs=pl.BlockSpec((ep_len, E), lambda l: (0, 0)),
        scratch_shapes=[pltpu.VMEM((S, E), jnp.float32)],
    )

    fn = pl.pallas_call(
        mapping_kernel,
        out_shape=jax.ShapeDtypeStruct((ep_len, E), jnp.float32),
        grid_spec=grid_spec,
        compiler_params=pltpu.CompilerParams(
            dimension_semantics=("arbitrary",),          # layers are sequential
            vmem_limit_bytes=48 * 1024 * 1024,           # explicit; streams per-layer weights
        ),
    )
    return fn(x, params["wqkv"], params["bqkv"], params["wo"], params["vec"],
              params["w1"], params["b1"], params["w2"],
              params["map_w"], params["map_b"])


# ----------------------------------------------------------------------------
# Pure-JAX reference (full multi-head attention with softmax — validates that
# the S=1 "attention == V" simplification preserves semantics exactly)
# ----------------------------------------------------------------------------
def _reference(img_embedded, params):
    x = img_embedded.astype(jnp.float32)
    E = params["embed_size"]
    H = params["n_heads"]
    L = params["wqkv"].shape[0]
    HI = jax.lax.Precision.HIGHEST

    for l in range(L):
        wqkv = params["wqkv"][l]
        bqkv = params["bqkv"][l]
        wo = params["wo"][l]
        vec = params["vec"][l]
        w1, b1, w2 = params["w1"][l], params["b1"][l], params["w2"][l]
        bo, g1, c1 = vec[0:1], vec[1:2], vec[2:3]
        b2, g2, c2 = vec[3:4], vec[4:5], vec[5:6]

        S = x.shape[0]
        Dh = E // H
        xb = x.astype(jnp.bfloat16)
        qkv = jnp.dot(xb, wqkv, preferred_element_type=jnp.float32) + bqkv
        q, k, v = qkv[:, :E], qkv[:, E:2 * E], qkv[:, 2 * E:]
        qh = q.reshape(S, H, Dh).transpose(1, 0, 2)
        kh = k.reshape(S, H, Dh).transpose(1, 0, 2)
        vh = v.reshape(S, H, Dh).transpose(1, 0, 2)
        s = jnp.einsum("hsd,htd->hst", qh, kh, precision=HI) / (Dh ** 0.5)
        p = jax.nn.softmax(s, axis=-1)
        ctx = jnp.einsum("hst,htd->hsd", p, vh, precision=HI)
        ctx = ctx.transpose(1, 0, 2).reshape(S, E)
        attn = jnp.dot(ctx.astype(jnp.bfloat16), wo,
                       preferred_element_type=jnp.float32) + bo

        h1 = _layernorm(x + attn, g1, c1)
        f = jnp.dot(h1.astype(jnp.bfloat16), w1,
                    preferred_element_type=jnp.float32) + b1
        f = jnp.maximum(f, 0.0)
        f = jnp.dot(f.astype(jnp.bfloat16), w2,
                    preferred_element_type=jnp.float32) + b2
        x = _layernorm(h1 + f, g2, c2)

    y = jnp.dot(x.astype(jnp.bfloat16), params["map_w"],
                preferred_element_type=jnp.float32) + params["map_b"]
    return y.reshape(params["ep_len"], E)


# ----------------------------------------------------------------------------
if __name__ == "__main__":
    EMBED_SIZE = 128          # small synthetic stand-in for CLIP/GPT-2 hidden size
    EP_LEN = 4
    N_HEADS = 4
    NUM_LAYERS = 3
    FORWARD_EXPANSION = 2

    key = jax.random.PRNGKey(0)
    k_in, k_par = jax.random.split(key)

    # Stand-in for ImageEncoder pooler_output: (1, embed_size)
    img_embedded = jax.random.normal(k_in, (1, EMBED_SIZE), jnp.float32)

    params = make_mapping_params(
        k_par, embed_size=EMBED_SIZE, n_heads=N_HEADS, num_layers=NUM_LAYERS,
        forward_expansion=FORWARD_EXPANSION, ep_len=EP_LEN)

    img_mapped = net_mapping_forward(img_embedded, params)
    img_mapped = jax.block_until_ready(img_mapped)

    ref = _reference(img_embedded, params)
    assert img_mapped.shape == (EP_LEN, EMBED_SIZE)
    assert jnp.allclose(img_mapped, ref, rtol=1e-3, atol=1e-3), "mismatch vs reference"

    print("KERNEL_OK")
</pallas_src>

<mosaic_0001>
module attributes {stable_mosaic.version = 11 : i64} {
  func.func @mapping_kernel(%arg0: i32, %arg1: memref<1x128xf32, #tpu.memory_space<vmem>>, %arg2: memref<1x128x128xbf16, #tpu.memory_space<vmem>>, %arg3: memref<1x1x128xf32, #tpu.memory_space<vmem>>, %arg4: memref<1x128x128xbf16, #tpu.memory_space<vmem>>, %arg5: memref<1x8x128xf32, #tpu.memory_space<vmem>>, %arg6: memref<1x128x256xbf16, #tpu.memory_space<vmem>>, %arg7: memref<1x1x256xf32, #tpu.memory_space<vmem>>, %arg8: memref<1x256x128xbf16, #tpu.memory_space<vmem>>, %arg9: memref<128x512xbf16, #tpu.memory_space<vmem>>, %arg10: memref<1x512xf32, #tpu.memory_space<vmem>>, %arg11: memref<4x128xf32, #tpu.memory_space<vmem>>, %arg12: memref<1x128xf32, #tpu.memory_space<vmem>>) attributes {dimension_semantics = [#tpu.dimension_semantics<arbitrary>], iteration_bounds = array<i64: 3>, scalar_prefetch = 0 : i64, scratch_operands = 1 : i64, tpu.core_type = #tpu.core_type<tc>, window_params = [{pipeline_mode = #tpu.pipeline_mode<synchronous>, transform_indices = @transform_0, window_bounds = array<i64: 1, 128>}, {transform_indices = @transform_1, window_bounds = array<i64: 1, 128, 128>}, {transform_indices = @transform_2, window_bounds = array<i64: 1, 1, 128>}, {transform_indices = @transform_3, window_bounds = array<i64: 1, 128, 128>}, {transform_indices = @transform_4, window_bounds = array<i64: 1, 8, 128>}, {transform_indices = @transform_5, window_bounds = array<i64: 1, 128, 256>}, {transform_indices = @transform_6, window_bounds = array<i64: 1, 1, 256>}, {transform_indices = @transform_7, window_bounds = array<i64: 1, 256, 128>}, {pipeline_mode = #tpu.pipeline_mode<synchronous>, transform_indices = @transform_8, window_bounds = array<i64: 128, 512>}, {pipeline_mode = #tpu.pipeline_mode<synchronous>, transform_indices = @transform_9, window_bounds = array<i64: 1, 512>}, {pipeline_mode = #tpu.pipeline_mode<synchronous>, transform_indices = @transform_10, window_bounds = array<i64: 4, 128>}]} {
    %c0_i32 = arith.constant 0 : i32
    %0 = arith.cmpi eq, %arg0, %c0_i32 : i32
    %1 = arith.extui %0 : i1 to i32
    %c0_i32_0 = arith.constant 0 : i32
    %2 = arith.cmpi ne, %1, %c0_i32_0 : i32
    scf.if %2 {
      %c0_40 = arith.constant 0 : index
      %c0_41 = arith.constant 0 : index
      %84 = vector.load %arg1[%c0_40, %c0_41] : memref<1x128xf32, #tpu.memory_space<vmem>>, vector<1x128xf32>
      %c0_42 = arith.constant 0 : index
      %c0_43 = arith.constant 0 : index
      %85 = vector.load %arg12[%c0_42, %c0_43] : memref<1x128xf32, #tpu.memory_space<vmem>>, vector<1x128xf32>
      tpu.vector_store %arg12[%c0_42, %c0_43], %84 {strides = array<i32>} : memref<1x128xf32, #tpu.memory_space<vmem>>, vector<1x128xf32>,
    } else {
    }
    %c0 = arith.constant 0 : index
    %c0_1 = arith.constant 0 : index
    %3 = vector.load %arg12[%c0, %c0_1] : memref<1x128xf32, #tpu.memory_space<vmem>>, vector<1x128xf32>
    %c0_2 = arith.constant 0 : index
    %c0_3 = arith.constant 0 : index
    %c0_4 = arith.constant 0 : index
    %4 = vector.load %arg5[%c0_2, %c0_3, %c0_4] : memref<1x8x128xf32, #tpu.memory_space<vmem>>, vector<1x8x128xf32>
    %5 = vector.shape_cast %4 : vector<1x8x128xf32> to vector<8x128xf32>
    %6 = vector.extract_strided_slice %5 {offsets = [0, 0], sizes = [1, 128], strides = [1, 1]} : vector<8x128xf32> to vector<1x128xf32>
    %7 = vector.extract_strided_slice %5 {offsets = [1, 0], sizes = [1, 128], strides = [1, 1]} : vector<8x128xf32> to vector<1x128xf32>
    %8 = vector.extract_strided_slice %5 {offsets = [2, 0], sizes = [1, 128], strides = [1, 1]} : vector<8x128xf32> to vector<1x128xf32>
    %9 = vector.extract_strided_slice %5 {offsets = [3, 0], sizes = [1, 128], strides = [1, 1]} : vector<8x128xf32> to vector<1x128xf32>
    %10 = vector.extract_strided_slice %5 {offsets = [4, 0], sizes = [1, 128], strides = [1, 1]} : vector<8x128xf32> to vector<1x128xf32>
    %11 = vector.extract_strided_slice %5 {offsets = [5, 0], sizes = [1, 128], strides = [1, 1]} : vector<8x128xf32> to vector<1x128xf32>
    %12 = arith.truncf %3 : vector<1x128xf32> to vector<1x128xbf16>
    %c0_5 = arith.constant 0 : index
    %c0_6 = arith.constant 0 : index
    %c0_7 = arith.constant 0 : index
    %13 = vector.load %arg2[%c0_5, %c0_6, %c0_7] : memref<1x128x128xbf16, #tpu.memory_space<vmem>>, vector<1x128x128xbf16>
    %14 = vector.shape_cast %13 : vector<1x128x128xbf16> to vector<128x128xbf16>
    %cst = arith.constant dense<0.000000e+00> : vector<1x128xf32>
    %15 = tpu.matmul %12, %14, %cst {dimension_numbers = #tpu.dot_dimension_numbers<[1], [0], [0], [1], [0, 0, 1, 1], [], []>} : vector<1x128xbf16>, vector<128x128xbf16>, vector<1x128xf32> -> vector<1x128xf32>
    %c0_8 = arith.constant 0 : index
    %c0_9 = arith.constant 0 : index
    %c0_10 = arith.constant 0 : index
    %16 = vector.load %arg3[%c0_8, %c0_9, %c0_10] : memref<1x1x128xf32, #tpu.memory_space<vmem>>, vector<1x1x128xf32>
    %17 = vector.shape_cast %16 : vector<1x1x128xf32> to vector<1x128xf32>
    %18 = arith.addf %15, %17 : vector<1x128xf32>
    %19 = arith.truncf %18 : vector<1x128xf32> to vector<1x128xbf16>
    %c0_11 = arith.constant 0 : index
    %c0_12 = arith.constant 0 : index
    %c0_13 = arith.constant 0 : index
    %20 = vector.load %arg4[%c0_11, %c0_12, %c0_13] : memref<1x128x128xbf16, #tpu.memory_space<vmem>>, vector<1x128x128xbf16>
    %21 = vector.shape_cast %20 : vector<1x128x128xbf16> to vector<128x128xbf16>
    %cst_14 = arith.constant dense<0.000000e+00> : vector<1x128xf32>
    %22 = tpu.matmul %19, %21, %cst_14 {dimension_numbers = #tpu.dot_dimension_numbers<[1], [0], [0], [1], [0, 0, 1, 1], [], []>} : vector<1x128xbf16>, vector<128x128xbf16>, vector<1x128xf32> -> vector<1x128xf32>
    %23 = arith.addf %22, %6 : vector<1x128xf32>
    %24 = arith.addf %3, %23 : vector<1x128xf32>
    %cst_15 = arith.constant dense<0.000000e+00> : vector<1xf32>
    %25 = vector.multi_reduction <add>, %24, %cst_15 [1] : vector<1x128xf32> to vector<1xf32>
    %26 = vector.shape_cast %25 : vector<1xf32> to vector<1x1xf32>
    %cst_16 = arith.constant 1.280000e+02 : f32
    %27 = vector.broadcast %cst_16 : f32 to vector<1x1xf32>
    %28 = arith.divf %26, %27 : vector<1x1xf32>
    %29 = vector.broadcast %28 : vector<1x1xf32> to vector<1x128xf32>
    %30 = arith.subf %24, %29 : vector<1x128xf32>
    %31 = arith.mulf %30, %30 : vector<1x128xf32>
    %cst_17 = arith.constant dense<0.000000e+00> : vector<1xf32>
    %32 = vector.multi_reduction <add>, %31, %cst_17 [1] : vector<1x128xf32> to vector<1xf32>
    %33 = vector.shape_cast %32 : vector<1xf32> to vector<1x1xf32>
    %cst_18 = arith.constant 1.280000e+02 : f32
    %34 = vector.broadcast %cst_18 : f32 to vector<1x1xf32>
    %35 = arith.divf %33, %34 : vector<1x1xf32>
    %36 = vector.broadcast %28 : vector<1x1xf32> to vector<1x128xf32>
    %37 = arith.subf %24, %36 : vector<1x128xf32>
    %cst_19 = arith.constant 9.99999974E-6 : f32
    %38 = vector.broadcast %cst_19 : f32 to vector<1x1xf32>
    %39 = arith.addf %35, %38 : vector<1x1xf32>
    %40 = math.rsqrt %39 : vector<1x1xf32>
    %41 = vector.broadcast %40 : vector<1x1xf32> to vector<1x128xf32>
    %42 = arith.mulf %37, %41 : vector<1x128xf32>
    %43 = arith.mulf %42, %7 : vector<1x128xf32>
    %44 = arith.addf %43, %8 : vector<1x128xf32>
    %45 = arith.truncf %44 : vector<1x128xf32> to vector<1x128xbf16>
    %c0_20 = arith.constant 0 : index
    %c0_21 = arith.constant 0 : index
    %c0_22 = arith.constant 0 : index
    %46 = vector.load %arg6[%c0_20, %c0_21, %c0_22] : memref<1x128x256xbf16, #tpu.memory_space<vmem>>, vector<1x128x256xbf16>
    %47 = vector.shape_cast %46 : vector<1x128x256xbf16> to vector<128x256xbf16>
    %cst_23 = arith.constant dense<0.000000e+00> : vector<1x256xf32>
    %48 = tpu.matmul %45, %47, %cst_23 {dimension_numbers = #tpu.dot_dimension_numbers<[1], [0], [0], [1], [0, 0, 1, 1], [], []>} : vector<1x128xbf16>, vector<128x256xbf16>, vector<1x256xf32> -> vector<1x256xf32>
    %c0_24 = arith.constant 0 : index
    %c0_25 = arith.constant 0 : index
    %c0_26 = arith.constant 0 : index
    %49 = vector.load %arg7[%c0_24, %c0_25, %c0_26] : memref<1x1x256xf32, #tpu.memory_space<vmem>>, vector<1x1x256xf32>
    %50 = vector.shape_cast %49 : vector<1x1x256xf32> to vector<1x256xf32>
    %51 = arith.addf %48, %50 : vector<1x256xf32>
    %cst_27 = arith.constant 0.000000e+00 : f32
    %52 = vector.broadcast %cst_27 : f32 to vector<1x256xf32>
    %53 = arith.maximumf %51, %52 : vector<1x256xf32>
    %54 = arith.truncf %53 : vector<1x256xf32> to vector<1x256xbf16>
    %c0_28 = arith.constant 0 : index
    %c0_29 = arith.constant 0 : index
    %c0_30 = arith.constant 0 : index
    %55 = vector.load %arg8[%c0_28, %c0_29, %c0_30] : memref<1x256x128xbf16, #tpu.memory_space<vmem>>, vector<1x256x128xbf16>
    %56 = vector.shape_cast %55 : vector<1x256x128xbf16> to vector<256x128xbf16>
    %cst_31 = arith.constant dense<0.000000e+00> : vector<1x128xf32>
    %57 = tpu.matmul %54, %56, %cst_31 {dimension_numbers = #tpu.dot_dimension_numbers<[1], [0], [0], [1], [0, 0, 1, 1], [], []>} : vector<1x256xbf16>, vector<256x128xbf16>, vector<1x128xf32> -> vector<1x128xf32>
    %58 = arith.addf %57, %9 : vector<1x128xf32>
    %59 = arith.addf %44, %58 : vector<1x128xf32>
    %cst_32 = arith.constant dense<0.000000e+00> : vector<1xf32>
    %60 = vector.multi_reduction <add>, %59, %cst_32 [1] : vector<1x128xf32> to vector<1xf32>
    %61 = vector.shape_cast %60 : vector<1xf32> to vector<1x1xf32>
    %cst_33 = arith.constant 1.280000e+02 : f32
    %62 = vector.broadcast %cst_33 : f32 to vector<1x1xf32>
    %63 = arith.divf %61, %62 : vector<1x1xf32>
    %64 = vector.broadcast %63 : vector<1x1xf32> to vector<1x128xf32>
    %65 = arith.subf %59, %64 : vector<1x128xf32>
    %66 = arith.mulf %65, %65 : vector<1x128xf32>
    %cst_34 = arith.constant dense<0.000000e+00> : vector<1xf32>
    %67 = vector.multi_reduction <add>, %66, %cst_34 [1] : vector<1x128xf32> to vector<1xf32>
    %68 = vector.shape_cast %67 : vector<1xf32> to vector<1x1xf32>
    %cst_35 = arith.constant 1.280000e+02 : f32
    %69 = vector.broadcast %cst_35 : f32 to vector<1x1xf32>
    %70 = arith.divf %68, %69 : vector<1x1xf32>
    %71 = vector.broadcast %63 : vector<1x1xf32> to vector<1x128xf32>
    %72 = arith.subf %59, %71 : vector<1x128xf32>
    %cst_36 = arith.constant 9.99999974E-6 : f32
    %73 = vector.broadcast %cst_36 : f32 to vector<1x1xf32>
    %74 = arith.addf %70, %73 : vector<1x1xf32>
    %75 = math.rsqrt %74 : vector<1x1xf32>
    %76 = vector.broadcast %75 : vector<1x1xf32> to vector<1x128xf32>
    %77 = arith.mulf %72, %76 : vector<1x128xf32>
    %78 = arith.mulf %77, %10 : vector<1x128xf32>
    %79 = arith.addf %78, %11 : vector<1x128xf32>
    %c0_37 = arith.constant 0 : index
    %c0_38 = arith.constant 0 : index
    %80 = vector.load %arg12[%c0_37, %c0_38] : memref<1x128xf32, #tpu.memory_space<vmem>>, vector<1x128xf32>
    tpu.vector_store %arg12[%c0_37, %c0_38], %79 {strides = array<i32>} : memref<1x128xf32, #tpu.memory_space<vmem>>, vector<1x128xf32>,
    %c2_i32 = arith.constant 2 : i32
    %81 = arith.cmpi eq, %arg0, %c2_i32 : i32
    %82 = arith.extui %81 : i1 to i32
    %c0_i32_39 = arith.constant 0 : i32
    %83 = arith.cmpi ne, %82, %c0_i32_39 : i32
    scf.if %83 {
      %84 = arith.truncf %79 : vector<1x128xf32> to vector<1x128xbf16>
      %c0_40 = arith.constant 0 : index
      %c0_41 = arith.constant 0 : index
      %85 = vector.load %arg9[%c0_40, %c0_41] : memref<128x512xbf16, #tpu.memory_space<vmem>>, vector<128x512xbf16>
      %cst_42 = arith.constant dense<0.000000e+00> : vector<1x512xf32>
      %86 = tpu.matmul %84, %85, %cst_42 {dimension_numbers = #tpu.dot_dimension_numbers<[1], [0], [0], [1], [0, 0, 1, 1], [], []>} : vector<1x128xbf16>, vector<128x512xbf16>, vector<1x512xf32> -> vector<1x512xf32>
      %c0_43 = arith.constant 0 : index
      %c0_44 = arith.constant 0 : index
      %87 = vector.load %arg10[%c0_43, %c0_44] : memref<1x512xf32, #tpu.memory_space<vmem>>, vector<1x512xf32>
      %88 = arith.addf %86, %87 : vector<1x512xf32>
      %89 = vector.extract_strided_slice %88 {offsets = [0, 0], sizes = [1, 128], strides = [1, 1]} : vector<1x512xf32> to vector<1x128xf32>
      %c0_45 = arith.constant 0 : index
      %c0_46 = arith.constant 0 : index
      %90 = vector.load %arg11[%c0_45, %c0_46] : memref<4x128xf32, #tpu.memory_space<vmem>>, vector<1x128xf32>
      tpu.vector_store %arg11[%c0_45, %c0_46], %89 {strides = array<i32>} : memref<4x128xf32, #tpu.memory_space<vmem>>, vector<1x128xf32>,
      %91 = vector.extract_strided_slice %88 {offsets = [0, 128], sizes = [1, 128], strides = [1, 1]} : vector<1x512xf32> to vector<1x128xf32>
      %c1 = arith.constant 1 : index
      %c0_47 = arith.constant 0 : index
      %92 = vector.load %arg11[%c1, %c0_47] : memref<4x128xf32, #tpu.memory_space<vmem>>, vector<1x128xf32>
      tpu.vector_store %arg11[%c1, %c0_47], %91 {strides = array<i32>} : memref<4x128xf32, #tpu.memory_space<vmem>>, vector<1x128xf32>,
      %93 = vector.extract_strided_slice %88 {offsets = [0, 256], sizes = [1, 128], strides = [1, 1]} : vector<1x512xf32> to vector<1x128xf32>
      %c2 = arith.constant 2 : index
      %c0_48 = arith.constant 0 : index
      %94 = vector.load %arg11[%c2, %c0_48] : memref<4x128xf32, #tpu.memory_space<vmem>>, vector<1x128xf32>
      tpu.vector_store %arg11[%c2, %c0_48], %93 {strides = array<i32>} : memref<4x128xf32, #tpu.memory_space<vmem>>, vector<1x128xf32>,
      %95 = vector.extract_strided_slice %88 {offsets = [0, 384], sizes = [1, 128], strides = [1, 1]} : vector<1x512xf32> to vector<1x128xf32>
      %c3 = arith.constant 3 : index
      %c0_49 = arith.constant 0 : index
      %96 = vector.load %arg11[%c3, %c0_49] : memref<4x128xf32, #tpu.memory_space<vmem>>, vector<1x128xf32>
      tpu.vector_store %arg11[%c3, %c0_49], %95 {strides = array<i32>} : memref<4x128xf32, #tpu.memory_space<vmem>>, vector<1x128xf32>,
    } else {
    }
    return
  }
  func.func @transform_0(%arg0: i32) -> (i32, i32) {
    %c0_i32 = arith.constant 0 : i32
    %c0_i32_0 = arith.constant 0 : i32
    %c0_i32_1 = arith.constant 0 : i32
    return %c0_i32, %c0_i32_0 : i32, i32
  }
  func.func @transform_1(%arg0: i32) -> (i32, i32, i32) {
    %c0_i32 = arith.constant 0 : i32
    %c2_i32 = arith.constant 2 : i32
    %c0_i32_0 = arith.constant 0 : i32
    return %arg0, %c0_i32, %c2_i32 : i32, i32, i32
  }
  func.func @transform_2(%arg0: i32) -> (i32, i32, i32) {
    %c0_i32 = arith.constant 0 : i32
    %c2_i32 = arith.constant 2 : i32
    %c0_i32_0 = arith.constant 0 : i32
    return %arg0, %c0_i32, %c2_i32 : i32, i32, i32
  }
  func.func @transform_3(%arg0: i32) -> (i32, i32, i32) {
    %c0_i32 = arith.constant 0 : i32
    %c0_i32_0 = arith.constant 0 : i32
    %c0_i32_1 = arith.constant 0 : i32
    return %arg0, %c0_i32, %c0_i32_0 : i32, i32, i32
  }
  func.func @transform_4(%arg0: i32) -> (i32, i32, i32) {
    %c0_i32 = arith.constant 0 : i32
    %c0_i32_0 = arith.constant 0 : i32
    %c0_i32_1 = arith.constant 0 : i32
    return %arg0, %c0_i32, %c0_i32_0 : i32, i32, i32
  }
  func.func @transform_5(%arg0: i32) -> (i32, i32, i32) {
    %c0_i32 = arith.constant 0 : i32
    %c0_i32_0 = arith.constant 0 : i32
    %c0_i32_1 = arith.constant 0 : i32
    return %arg0, %c0_i32, %c0_i32_0 : i32, i32, i32
  }
  func.func @transform_6(%arg0: i32) -> (i32, i32, i32) {
    %c0_i32 = arith.constant 0 : i32
    %c0_i32_0 = arith.constant 0 : i32
    %c0_i32_1 = arith.constant 0 : i32
    return %arg0, %c0_i32, %c0_i32_0 : i32, i32, i32
  }
  func.func @transform_7(%arg0: i32) -> (i32, i32, i32) {
    %c0_i32 = arith.constant 0 : i32
    %c0_i32_0 = arith.constant 0 : i32
    %c0_i32_1 = arith.constant 0 : i32
    return %arg0, %c0_i32, %c0_i32_0 : i32, i32, i32
  }
  func.func @transform_8(%arg0: i32) -> (i32, i32) {
    %c0_i32 = arith.constant 0 : i32
    %c0_i32_0 = arith.constant 0 : i32
    %c0_i32_1 = arith.constant 0 : i32
    return %c0_i32, %c0_i32_0 : i32, i32
  }
  func.func @transform_9(%arg0: i32) -> (i32, i32) {
    %c0_i32 = arith.constant 0 : i32
    %c0_i32_0 = arith.constant 0 : i32
    %c0_i32_1 = arith.constant 0 : i32
    return %c0_i32, %c0_i32_0 : i32, i32
  }
  func.func @transform_10(%arg0: i32) -> (i32, i32) {
    %c0_i32 = arith.constant 0 : i32
    %c0_i32_0 = arith.constant 0 : i32
    %c0_i32_1 = arith.constant 0 : i32
    return %c0_i32, %c0_i32_0 : i32, i32
  }
}

</mosaic_0001>

<llo_original>
// kernel: tpu_custom_call.1
$region0: #{tpu_custom_call.1}
  #allocation0 [shape = 'u32[]', space=smem, size = 0x4, offset = 0x4, fixed_abs, tag = 'smem constant byte address 0x4 - core index']
  #allocation1 [shape = 'u32[144,128]{1,0:T(1,128)}', space=vmem, size = 0x12000, scoped, tag = 'internal scratch']
  #allocation2 [shape = 'f32[1,128]{1,0:T(1,128)}', space=vmem, size = 0x200, scoped, tag = 'scratch operand']
  %s0 = inlined_call_operand.hbm [shape: f32[1,128], index: 0, kind: input, shape index: {}]
  %s1 = inlined_call_operand.hbm [shape: bf16[3,128,384], index: 1, kind: input, shape index: {}]
  %s2 = inlined_call_operand.hbm [shape: f32[3,1,384], index: 2, kind: input, shape index: {}]
  %s3 = inlined_call_operand.hbm [shape: bf16[3,128,128], index: 3, kind: input, shape index: {}]
  %s4 = inlined_call_operand.hbm [shape: f32[3,8,128], index: 4, kind: input, shape index: {}]
  %s5 = inlined_call_operand.hbm [shape: bf16[3,128,256], index: 5, kind: input, shape index: {}]
  %s6 = inlined_call_operand.vmem [shape: f32[3,1,256], index: 6, kind: input, shape index: {}]
  %s7 = inlined_call_operand.hbm [shape: bf16[3,256,128], index: 7, kind: input, shape index: {}]
  %s8 = inlined_call_operand.hbm [shape: bf16[128,512], index: 8, kind: input, shape index: {}]
  %s9 = inlined_call_operand.vmem [shape: f32[1,512], index: 9, kind: input, shape index: {}]
  %s10 = inlined_call_operand.hbm [shape: f32[4,128], index: 10, kind: output, shape index: {}]
  %s11 = sld [smem:[#allocation0]]
  $region113: #{tpu_custom_call.1} parent=0
    _
  %s13 = ssub.s32 1, %s11
  %s14 = scalar_select 0, %s13, %s11
  $region1: #{tpu_custom_call.1} parent=0
    #allocation3 [shape = 'u8[512]{0}', space=vmem, size = 0x400, scoped, tag = 'input window, operand 0, single buffered']
    #allocation4 [shape = 's32[2]{0}', space=sflag, size = 0x8, scoped, tag = 'scoped memory for tpu_custom_call.1']
    #allocation5 [shape = 's32[2]{0}', space=sflag, size = 0x8, scoped, tag = 'scoped memory for tpu_custom_call.1']
    #allocation6 [shape = 'u8[65536]{0}', space=vmem, size = 0x10000, scoped, tag = 'input window, operand 1']
    #allocation7 [shape = 's32[2]{0}', space=sflag, size = 0x8, scoped, tag = 'scoped memory for tpu_custom_call.1']
    #allocation8 [shape = 'u8[1024]{0}', space=vmem, size = 0x400, scoped, tag = 'input window, operand 2']
    #allocation9 [shape = 'u8[65536]{0}', space=vmem, size = 0x10000, scoped, tag = 'input window, operand 3']
    #allocation10 [shape = 's32[2]{0}', space=sflag, size = 0x8, scoped, tag = 'scoped memory for tpu_custom_call.1']
    #allocation11 [shape = 'u8[8192]{0}', space=vmem, size = 0x2000, scoped, tag = 'input window, operand 4']
    #allocation12 [shape = 'u8[131072]{0}', space=vmem, size = 0x20000, scoped, tag = 'input window, operand 5']
    #allocation13 [shape = 's32[2]{0}', space=sflag, size = 0x8, scoped, tag = 'scoped memory for tpu_custom_call.1']
    #allocation14 [shape = 'u8[131072]{0}', space=vmem, size = 0x20000, scoped, tag = 'input window, operand 7']
    #allocation15 [shape = 'u8[131072]{0}', space=vmem, size = 0x20000, scoped, tag = 'input window, operand 8, single buffered']
    #allocation16 [shape = 's32[1]{0}', space=sflag, size = 0x4, scoped, tag = 'scoped memory for tpu_custom_call.1']
    #allocation17 [shape = 'u8[2048]{0}', space=vmem, size = 0x800, scoped, tag = 'output window, operand 0, single buffered']
    %15 = vsyncpa [#allocation4], 0
    %16 = vsyncpa [#allocation7], 0
    %s17 = scalar_lea.sflag [#allocation7], 1
    %18 = vsyncpa %s17, 0
    %19 = vsyncpa [#allocation10], 0
    %s20 = scalar_lea.sflag [#allocation10], 1
    %21 = vsyncpa %s20, 0
    %22 = vsyncpa [#allocation13], 0
    %s23 = scalar_lea.sflag [#allocation13], 1
    %24 = vsyncpa %s23, 0
    %25 = vsyncpa [#allocation16], 0
    %26 = vsyncpa [#allocation5], 0
    loop: start=0, step=1, limit=5
    $region2: #{tpu_custom_call.1} parent=1 // loop_pre_header
      _
    $region3: #{tpu_custom_call.1} parent=1 // loop_header
      %s28 = sphi 0, %s32
      %p29 = scmp.ge.s32.totalorder %s28, 5
      %s36 = sphi 0, %s36
      %s38 = sphi 0, %s36
      %s39 = sphi 0, %s38
      %s53 = sphi 0, %s39
      %s59 = sphi 0, %s61
      %s62 = sphi 0, %s59
      %s63 = sphi 0, %s62
      %s79 = sphi 0, %s63
      %s85 = sphi 0, %s87
      %s88 = sphi 0, %s85
      %s89 = sphi 0, %s88
      %s105 = sphi 0, %s89
      %s111 = sphi 0, %s113
      %s114 = sphi 0, %s111
      %s115 = sphi 0, %s114
      %s131 = sphi 0, %s115
      %s137 = sphi 0, %s139
      %s140 = sphi 0, %s137
      %s141 = sphi 0, %s140
      %s157 = sphi 0, %s141
      %s163 = sphi 0, %s165
      %s166 = sphi 0, %s163
      %s167 = sphi 0, %s166
      %s183 = sphi 0, %s167
      %s189 = sphi 0, %s191
      %s192 = sphi 0, %s189
      %s193 = sphi 0, %s192
      %s209 = sphi 0, %s193
      %s215 = sphi 0, %s217
      %s218 = sphi 0, %s215
      %s219 = sphi 0, %s218
      %s235 = sphi 0, %s219
      %s239 = sphi 0, %s239
      %s241 = sphi 0, %s239
      %s242 = sphi 0, %s241
      %s256 = sphi 0, %s242
      %s260 = sphi 0, %s260
      %s262 = sphi 0, %s260
      %s263 = sphi 0, %s262
      %s277 = sphi 0, %s263
      %s281 = sphi 0, %s281
      %s283 = sphi 0, %s281
      %s284 = sphi 0, %s283
      %s298 = sphi 0, %s284
    $region4: #{tpu_custom_call.1} parent=1 // loop_header_branch
      %31 = sbr.rel (%p29) target = $region8
    $region5: #{tpu_custom_call.1} parent=1 // loop_body
      %s33 = ssub.s32 %s28, 1
      %s34 = ssub.s32 %s28, 2
      %s35 = sadd.s32 %s28, 1
      %s37 = sadd.s32 %s36, 1
      %p40 = scmp.eq.s32.totalorder %s28, 2
      %p41 = scmp.ne.s32.totalorder %s36, %s38
      %p42 = scmp.eq.s32.totalorder %s28, 0
      %p43 = por %p41, %p42
      %p44 = scmp.ne.s32.totalorder %s36, %s38
      %p45 = scmp.eq.s32.totalorder %s33, 2
      %p46 = por %p44, %p45
      %p47 = scmp.ne.s32.totalorder %s38, %s39
      %p48 = scmp.eq.s32.totalorder %s33, 0
      %p49 = por %p47, %p48
      %p50 = scmp.ne.s32.totalorder %s38, %s39
      %p51 = scmp.eq.s32.totalorder %s34, 2
      %p52 = por %p50, %p51
      %p54 = scmp.ne.s32.totalorder %s39, %s53
      %p55 = scmp.eq.s32.totalorder %s34, 0
      %p56 = por %p54, %p55
      %s57 = ssub.s32 %s28, %s35
      %p58 = scmp.eq.s32.totalorder %s57, 0
      %s60 = sadd.s32 %s59, 1
      %s61 = scalar_select %p58, %s59, %s60
      %p64 = pneg %p58
      %p65 = scmp.eq.s32.totalorder %s28, 2
      %p66 = por %p64, %p65
      %p67 = scmp.ne.s32.totalorder %s59, %s62
      %p68 = scmp.eq.s32.totalorder %s28, 0
      %p69 = por %p67, %p68
      %p70 = scmp.ne.s32.totalorder %s59, %s62
      %p71 = scmp.eq.s32.totalorder %s33, 2
      %p72 = por %p70, %p71
      %p73 = scmp.ne.s32.totalorder %s62, %s63
      %p74 = scmp.eq.s32.totalorder %s33, 0
      %p75 = por %p73, %p74
      %p76 = scmp.ne.s32.totalorder %s62, %s63
      %p77 = scmp.eq.s32.totalorder %s34, 2
      %p78 = por %p76, %p77
      %p80 = scmp.ne.s32.totalorder %s63, %s79
      %p81 = scmp.eq.s32.totalorder %s34, 0
      %p82 = por %p80, %p81
      %s83 = ssub.s32 %s28, %s35
      %p84 = scmp.eq.s32.totalorder %s83, 0
      %s86 = sadd.s32 %s85, 1
      %s87 = scalar_select %p84, %s85, %s86
      %p90 = pneg %p84
      %p91 = scmp.eq.s32.totalorder %s28, 2
      %p92 = por %p90, %p91
      %p93 = scmp.ne.s32.totalorder %s85, %s88
      %p94 = scmp.eq.s32.totalorder %s28, 0
      %p95 = por %p93, %p94
      %p96 = scmp.ne.s32.totalorder %s85, %s88
      %p97 = scmp.eq.s32.totalorder %s33, 2
      %p98 = por %p96, %p97
      %p99 = scmp.ne.s32.totalorder %s88, %s89
      %p100 = scmp.eq.s32.totalorder %s33, 0
      %p101 = por %p99, %p100
      %p102 = scmp.ne.s32.totalorder %s88, %s89
      %p103 = scmp.eq.s32.totalorder %s34, 2
      %p104 = por %p102, %p103
      %p106 = scmp.ne.s32.totalorder %s89, %s105
      %p107 = scmp.eq.s32.totalorder %s34, 0
      %p108 = por %p106, %p107
      %s109 = ssub.s32 %s28, %s35
      %p110 = scmp.eq.s32.totalorder %s109, 0
      %s112 = sadd.s32 %s111, 1
      %s113 = scalar_select %p110, %s111, %s112
      %p116 = pneg %p110
      %p117 = scmp.eq.s32.totalorder %s28, 2
      %p118 = por %p116, %p117
      %p119 = scmp.ne.s32.totalorder %s111, %s114
      %p120 = scmp.eq.s32.totalorder %s28, 0
      %p121 = por %p119, %p120
      %p122 = scmp.ne.s32.totalorder %s111, %s114
      %p123 = scmp.eq.s32.totalorder %s33, 2
      %p124 = por %p122, %p123
      %p125 = scmp.ne.s32.totalorder %s114, %s115
      %p126 = scmp.eq.s32.totalorder %s33, 0
      %p127 = por %p125, %p126
      %p128 = scmp.ne.s32.totalorder %s114, %s115
      %p129 = scmp.eq.s32.totalorder %s34, 2
      %p130 = por %p128, %p129
      %p132 = scmp.ne.s32.totalorder %s115, %s131
      %p133 = scmp.eq.s32.totalorder %s34, 0
      %p134 = por %p132, %p133
      %s135 = ssub.s32 %s28, %s35
      %p136 = scmp.eq.s32.totalorder %s135, 0
      %s138 = sadd.s32 %s137, 1
      %s139 = scalar_select %p136, %s137, %s138
      %p142 = pneg %p136
      %p143 = scmp.eq.s32.totalorder %s28, 2
      %p144 = por %p142, %p143
      %p145 = scmp.ne.s32.totalorder %s137, %s140
      %p146 = scmp.eq.s32.totalorder %s28, 0
      %p147 = por %p145, %p146
      %p148 = scmp.ne.s32.totalorder %s137, %s140
      %p149 = scmp.eq.s32.totalorder %s33, 2
      %p150 = por %p148, %p149
      %p151 = scmp.ne.s32.totalorder %s140, %s141
      %p152 = scmp.eq.s32.totalorder %s33, 0
      %p153 = por %p151, %p152
      %p154 = scmp.ne.s32.totalorder %s140, %s141
      %p155 = scmp.eq.s32.totalorder %s34, 2
      %p156 = por %p154, %p155
      %p158 = scmp.ne.s32.totalorder %s141, %s157
      %p159 = scmp.eq.s32.totalorder %s34, 0
      %p160 = por %p158, %p159
      %s161 = ssub.s32 %s28, %s35
      %p162 = scmp.eq.s32.totalorder %s161, 0
      %s164 = sadd.s32 %s163, 1
      %s165 = scalar_select %p162, %s163, %s164
      %p168 = pneg %p162
      %p169 = scmp.eq.s32.totalorder %s28, 2
      %p170 = por %p168, %p169
      %p171 = scmp.ne.s32.totalorder %s163, %s166
      %p172 = scmp.eq.s32.totalorder %s28, 0
      %p173 = por %p171, %p172
      %p174 = scmp.ne.s32.totalorder %s163, %s166
      %p175 = scmp.eq.s32.totalorder %s33, 2
      %p176 = por %p174, %p175
      %p177 = scmp.ne.s32.totalorder %s166, %s167
      %p178 = scmp.eq.s32.totalorder %s33, 0
      %p179 = por %p177, %p178
      %p180 = scmp.ne.s32.totalorder %s166, %s167
      %p181 = scmp.eq.s32.totalorder %s34, 2
      %p182 = por %p180, %p181
      %p184 = scmp.ne.s32.totalorder %s167, %s183
      %p185 = scmp.eq.s32.totalorder %s34, 0
      %p186 = por %p184, %p185
      %s187 = ssub.s32 %s28, %s35
      %p188 = scmp.eq.s32.totalorder %s187, 0
      %s190 = sadd.s32 %s189, 1
      %s191 = scalar_select %p188, %s189, %s190
      %p194 = pneg %p188
      %p195 = scmp.eq.s32.totalorder %s28, 2
      %p196 = por %p194, %p195
      %p197 = scmp.ne.s32.totalorder %s189, %s192
      %p198 = scmp.eq.s32.totalorder %s28, 0
      %p199 = por %p197, %p198
      %p200 = scmp.ne.s32.totalorder %s189, %s192
      %p201 = scmp.eq.s32.totalorder %s33, 2
      %p202 = por %p200, %p201
      %p203 = scmp.ne.s32.totalorder %s192, %s193
      %p204 = scmp.eq.s32.totalorder %s33, 0
      %p205 = por %p203, %p204
      %p206 = scmp.ne.s32.totalorder %s192, %s193
      %p207 = scmp.eq.s32.totalorder %s34, 2
      %p208 = por %p206, %p207
      %p210 = scmp.ne.s32.totalorder %s193, %s209
      %p211 = scmp.eq.s32.totalorder %s34, 0
      %p212 = por %p210, %p211
      %s213 = ssub.s32 %s28, %s35
      %p214 = scmp.eq.s32.totalorder %s213, 0
      %s216 = sadd.s32 %s215, 1
      %s217 = scalar_select %p214, %s215, %s216
      %p220 = pneg %p214
      %p221 = scmp.eq.s32.totalorder %s28, 2
      %p222 = por %p220, %p221
      %p223 = scmp.ne.s32.totalorder %s215, %s218
      %p224 = scmp.eq.s32.totalorder %s28, 0
      %p225 = por %p223, %p224
      %p226 = scmp.ne.s32.totalorder %s215, %s218
      %p227 = scmp.eq.s32.totalorder %s33, 2
      %p228 = por %p226, %p227
      %p229 = scmp.ne.s32.totalorder %s218, %s219
      %p230 = scmp.eq.s32.totalorder %s33, 0
      %p231 = por %p229, %p230
      %p232 = scmp.ne.s32.totalorder %s218, %s219
      %p233 = scmp.eq.s32.totalorder %s34, 2
      %p234 = por %p232, %p233
      %p236 = scmp.ne.s32.totalorder %s219, %s235
      %p237 = scmp.eq.s32.totalorder %s34, 0
      %p238 = por %p236, %p237
      %s240 = sadd.s32 %s239, 1
      %p243 = scmp.eq.s32.totalorder %s28, 2
      %p244 = scmp.ne.s32.totalorder %s239, %s241
      %p245 = scmp.eq.s32.totalorder %s28, 0
      %p246 = por %p244, %p245
      %p247 = scmp.ne.s32.totalorder %s239, %s241
      %p248 = scmp.eq.s32.totalorder %s33, 2
      %p249 = por %p247, %p248
      %p250 = scmp.ne.s32.totalorder %s241, %s242
      %p251 = scmp.eq.s32.totalorder %s33, 0
      %p252 = por %p250, %p251
      %p253 = scmp.ne.s32.totalorder %s241, %s242
      %p254 = scmp.eq.s32.totalorder %s34, 2
      %p255 = por %p253, %p254
      %p257 = scmp.ne.s32.totalorder %s242, %s256
      %p258 = scmp.eq.s32.totalorder %s34, 0
      %p259 = por %p257, %p258
      %s261 = sadd.s32 %s260, 1
      %p264 = scmp.eq.s32.totalorder %s28, 2
      %p265 = scmp.ne.s32.totalorder %s260, %s262
      %p266 = scmp.eq.s32.totalorder %s28, 0
      %p267 = por %p265, %p266
      %p268 = scmp.ne.s32.totalorder %s260, %s262
      %p269 = scmp.eq.s32.totalorder %s33, 2
      %p270 = por %p268, %p269
      %p271 = scmp.ne.s32.totalorder %s262, %s263
      %p272 = scmp.eq.s32.totalorder %s33, 0
      %p273 = por %p271, %p272
      %p274 = scmp.ne.s32.totalorder %s262, %s263
      %p275 = scmp.eq.s32.totalorder %s34, 2
      %p276 = por %p274, %p275
      %p278 = scmp.ne.s32.totalorder %s263, %s277
      %p279 = scmp.eq.s32.totalorder %s34, 0
      %p280 = por %p278, %p279
      %s282 = sadd.s32 %s281, 1
      %p285 = scmp.eq.s32.totalorder %s28, 2
      %p286 = scmp.ne.s32.totalorder %s281, %s283
      %p287 = scmp.eq.s32.totalorder %s28, 0
      %p288 = por %p286, %p287
      %p289 = scmp.ne.s32.totalorder %s281, %s283
      %p290 = scmp.eq.s32.totalorder %s33, 2
      %p291 = por %p289, %p290
      %p292 = scmp.ne.s32.totalorder %s283, %s284
      %p293 = scmp.eq.s32.totalorder %s33, 0
      %p294 = por %p292, %p293
      %p295 = scmp.ne.s32.totalorder %s283, %s284
      %p296 = scmp.eq.s32.totalorder %s34, 2
      %p297 = por %p295, %p296
      %p299 = scmp.ne.s32.totalorder %s284, %s298
      %p300 = scmp.eq.s32.totalorder %s34, 0
      %p301 = por %p299, %p300
      %p302 = scmp.le.s32.totalorder 1, %s28
      %p303 = scmp.lt.s32.totalorder %s28, 4
      %p304 = pnand %p302, %p303
      %p305 = pneg %p304
      // Predicated region
      $region9: #{tpu_custom_call.1} parent=5 // pred_check
        _
      $region10: #{tpu_custom_call.1} parent=5 // pred_check_branch
        %307 = sbr.rel (%p304) target = $region12
      $region11: #{tpu_custom_call.1} parent=5 // pred_region
        %s308 = ssub.s32 %s28, 1
        // Predicated region
        $region13: #{tpu_custom_call.1} parent=11 // pred_check
          %p309 = pneg %p49
        $region14: #{tpu_custom_call.1} parent=11 // pred_check_branch
          %311 = sbr.rel (%p309) target = $region16
        $region15: #{tpu_custom_call.1} parent=11 // pred_region
          %s313 = ssub.s32 16, 16
          %314 = vsyncadd [#allocation4], %s313
          %s316 = sshll.u32 [#allocation3], 4
          %s317 = int_to_ptr.vmem [resolvable:$true] %s316
          %319 = dma.hbm_to_vmem [thread:$0]  %s0, 16, %s317, [#allocation4]
        $region16: #{tpu_custom_call.1} parent=11 // pred_fallthru
          _
        // Predicated region
        $region17: #{tpu_custom_call.1} parent=11 // pred_check
          %p320 = pneg %p252
        $region18: #{tpu_custom_call.1} parent=11 // pred_check_branch
          %322 = sbr.rel (%p320) target = $region20
        $region19: #{tpu_custom_call.1} parent=11 // pred_region
          %s324 = ssub.s32 4096, 4096
          %325 = vsyncadd [#allocation16], %s324
          %s326 = sshll.u32 [#allocation15], 4
          %s327 = int_to_ptr.vmem [resolvable:$true] %s326
          %332 = dma.hbm_to_vmem [thread:$0]  %s8, 4096, %s327, [#allocation16], 256, 256, 16
        $region20: #{tpu_custom_call.1} parent=11 // pred_fallthru
          _
        // Predicated region
        $region21: #{tpu_custom_call.1} parent=11 // pred_check
          %p333 = pneg %p273
        $region22: #{tpu_custom_call.1} parent=11 // pred_check_branch
          %335 = sbr.rel (%p333) target = $region24
        $region23: #{tpu_custom_call.1} parent=11 // pred_region
          _
        $region24: #{tpu_custom_call.1} parent=11 // pred_fallthru
          _
      $region12: #{tpu_custom_call.1} parent=5 // pred_fallthru
        _
      %p336 = scmp.lt.s32.totalorder %s28, 3
      // Predicated region
      $region25: #{tpu_custom_call.1} parent=5 // pred_check
        %p337 = pneg %p336
      $region26: #{tpu_custom_call.1} parent=5 // pred_check_branch
        %339 = sbr.rel (%p337) target = $region28
      $region27: #{tpu_custom_call.1} parent=5 // pred_region
        // Predicated region
        $region29: #{tpu_custom_call.1} parent=27 // pred_check
          %p340 = pneg %p69
        $region30: #{tpu_custom_call.1} parent=27 // pred_check_branch
          %342 = sbr.rel (%p340) target = $region32
        $region31: #{tpu_custom_call.1} parent=27 // pred_region
          %s343 = sand.u32 %s28, 1
          %s344 = scalar_lea.sflag [#allocation7], %s343
          %s345 = sand.u32 %s59, 1
          %s346 = smul.addr %s345, 64
          %s347 = scalar_lea.vmem [#allocation6], %s346
          %s349 = ssub.s32 1024, 1024
          %350 = vsyncadd %s344, %s349
          %s351 = smul.addr %s28, 48
          %s352 = sadd.s32 2, %s351
          %s353 = smul.addr %s352, 64
          %s354 = scalar_lea.hbm %s1, %s353
          %s355 = sshll.u32 %s347, 4
          %s356 = int_to_ptr.vmem [resolvable:$true] %s355
          %361 = dma.hbm_to_vmem [thread:$0]  %s354, 1024, %s356, %s344, 192, 64, 4
        $region32: #{tpu_custom_call.1} parent=27 // pred_fallthru
          _
        // Predicated region
        $region33: #{tpu_custom_call.1} parent=27 // pred_check
          %p362 = pneg %p95
        $region34: #{tpu_custom_call.1} parent=27 // pred_check_branch
          %364 = sbr.rel (%p362) target = $region36
        $region35: #{tpu_custom_call.1} parent=27 // pred_region
          %s365 = sand.u32 %s28, 1
          %s366 = scalar_lea.sflag [#allocation7], %s365
          %s367 = sand.u32 %s85, 1
          %s368 = scalar_lea.vmem [#allocation8], %s367
          %s370 = ssub.s32 16, 16
          %371 = vsyncadd %s366, %s370
          %s372 = smul.addr %s28, 3
          %s373 = sadd.s32 2, %s372
          %s374 = smul.addr %s373, 16
          %s375 = scalar_lea.hbm %s2, %s374
          %s377 = sshll.u32 %s368, 4
          %s378 = int_to_ptr.vmem [resolvable:$true] %s377
          %380 = dma.hbm_to_vmem [thread:$0]  %s375, 16, %s378, %s366
        $region36: #{tpu_custom_call.1} parent=27 // pred_fallthru
          _
        // Predicated region
        $region37: #{tpu_custom_call.1} parent=27 // pred_check
          %p381 = pneg %p121
        $region38: #{tpu_custom_call.1} parent=27 // pred_check_branch
          %383 = sbr.rel (%p381) target = $region40
        $region39: #{tpu_custom_call.1} parent=27 // pred_region
          %s384 = sand.u32 %s28, 1
          %s385 = scalar_lea.sflag [#allocation10], %s384
          %s386 = sand.u32 %s111, 1
          %s387 = smul.addr %s386, 64
          %s388 = scalar_lea.vmem [#allocation9], %s387
          %s390 = ssub.s32 1024, 1024
          %391 = vsyncadd %s385, %s390
          %s392 = smul.addr %s28, 16
          %s393 = smul.addr %s392, 64
          %s394 = scalar_lea.hbm %s3, %s393
          %s395 = sshll.u32 %s388, 4
          %s396 = int_to_ptr.vmem [resolvable:$true] %s395
          %401 = dma.hbm_to_vmem [thread:$0]  %s394, 1024, %s396, %s385, 64, 64, 4
        $region40: #{tpu_custom_call.1} parent=27 // pred_fallthru
          _
        // Predicated region
        $region41: #{tpu_custom_call.1} parent=27 // pred_check
          %p402 = pneg %p147
        $region42: #{tpu_custom_call.1} parent=27 // pred_check_branch
          %404 = sbr.rel (%p402) target = $region44
        $region43: #{tpu_custom_call.1} parent=27 // pred_region
          %s405 = sand.u32 %s28, 1
          %s406 = scalar_lea.sflag [#allocation10], %s405
          %s407 = sand.u32 %s137, 1
          %s408 = smul.addr %s407, 8
          %s409 = scalar_lea.vmem [#allocation11], %s408
          %s411 = ssub.s32 128, 128
          %412 = vsyncadd %s406, %s411
          %s413 = smul.addr %s28, 128
          %s414 = scalar_lea.hbm %s4, %s413
          %s416 = sshll.u32 %s409, 4
          %s417 = int_to_ptr.vmem [resolvable:$true] %s416
          %419 = dma.hbm_to_vmem [thread:$0]  %s414, 128, %s417, %s406
        $region44: #{tpu_custom_call.1} parent=27 // pred_fallthru
          _
        // Predicated region
        $region45: #{tpu_custom_call.1} parent=27 // pred_check
          %p420 = pneg %p173
        $region46: #{tpu_custom_call.1} parent=27 // pred_check_branch
          %422 = sbr.rel (%p420) target = $region48
        $region47: #{tpu_custom_call.1} parent=27 // pred_region
          %s423 = sand.u32 %s28, 1
          %s424 = scalar_lea.sflag [#allocation13], %s423
          %s425 = sand.u32 %s163, 1
          %s426 = smul.addr %s425, 128
          %s427 = scalar_lea.vmem [#allocation12], %s426
          %s429 = ssub.s32 2048, 2048
          %430 = vsyncadd %s424, %s429
          %s431 = smul.addr %s28, 32
          %s432 = smul.addr %s431, 64
          %s433 = scalar_lea.hbm %s5, %s432
          %s434 = sshll.u32 %s427, 4
          %s435 = int_to_ptr.vmem [resolvable:$true] %s434
          %440 = dma.hbm_to_vmem [thread:$0]  %s433, 2048, %s435, %s424, 128, 128, 8
        $region48: #{tpu_custom_call.1} parent=27 // pred_fallthru
          _
        // Predicated region
        $region49: #{tpu_custom_call.1} parent=27 // pred_check
          %p441 = pneg %p199
        $region50: #{tpu_custom_call.1} parent=27 // pred_check_branch
          %443 = sbr.rel (%p441) target = $region52
        $region51: #{tpu_custom_call.1} parent=27 // pred_region
          %p444 = scmp.lt.s32.totalorder %s28, 2
          %s445 = scalar_select %p444, %s28, 2
          %s446 = smul.addr %s445, 2
          %s447 = scalar_lea.vmem %s6, %s446
        $region52: #{tpu_custom_call.1} parent=27 // pred_fallthru
          _
        // Predicated region
        $region53: #{tpu_custom_call.1} parent=27 // pred_check
          %p448 = pneg %p225
        $region54: #{tpu_custom_call.1} parent=27 // pred_check_branch
          %450 = sbr.rel (%p448) target = $region56
        $region55: #{tpu_custom_call.1} parent=27 // pred_region
          %s451 = sand.u32 %s28, 1
          %s452 = scalar_lea.sflag [#allocation13], %s451
          %s453 = sand.u32 %s215, 1
          %s454 = smul.addr %s453, 128
          %s455 = scalar_lea.vmem [#allocation14], %s454
          %s457 = ssub.s32 2048, 2048
          %458 = vsyncadd %s452, %s457
          %s459 = smul.addr %s28, 32
          %s460 = smul.addr %s459, 64
          %s461 = scalar_lea.hbm %s7, %s460
          %s462 = sshll.u32 %s455, 4
          %s463 = int_to_ptr.vmem [resolvable:$true] %s462
          %468 = dma.hbm_to_vmem [thread:$0]  %s461, 2048, %s463, %s452, 64, 64, 4
        $region56: #{tpu_custom_call.1} parent=27 // pred_fallthru
          _
      $region28: #{tpu_custom_call.1} parent=5 // pred_fallthru
        _
      %p469 = scmp.le.s32.totalorder 1, %s28
      %p470 = scmp.lt.s32.totalorder %s28, 4
      %p471 = pnand %p469, %p470
      %p472 = pneg %p471
      // Predicated region
      $region57: #{tpu_custom_call.1} parent=5 // pred_check
        _
      $region58: #{tpu_custom_call.1} parent=5 // pred_check_branch
        %474 = sbr.rel (%p471) target = $region60
      $region59: #{tpu_custom_call.1} parent=5 // pred_region
        %s475 = ssub.s32 %s28, 1
        // Predicated region
        $region61: #{tpu_custom_call.1} parent=59 // pred_check
          %p476 = pneg %p49
        $region62: #{tpu_custom_call.1} parent=59 // pred_check_branch
          %478 = sbr.rel (%p476) target = $region64
        $region63: #{tpu_custom_call.1} parent=59 // pred_region
          %479 = dma.done [#allocation4], 16
        $region64: #{tpu_custom_call.1} parent=59 // pred_fallthru
          _
        %s480 = sand.u32 %s33, 1
        %s481 = scalar_lea.sflag [#allocation7], %s480
        %s482 = sand.u32 %s62, 1
        %s483 = smul.addr %s482, 64
        %s484 = scalar_lea.vmem [#allocation6], %s483
        // Predicated region
        $region65: #{tpu_custom_call.1} parent=59 // pred_check
          %p485 = pneg %p75
        $region66: #{tpu_custom_call.1} parent=59 // pred_check_branch
          %487 = sbr.rel (%p485) target = $region68
        $region67: #{tpu_custom_call.1} parent=59 // pred_region
          %488 = dma.done %s481, 1024
        $region68: #{tpu_custom_call.1} parent=59 // pred_fallthru
          _
        %s489 = sand.u32 %s33, 1
        %s490 = scalar_lea.sflag [#allocation7], %s489
        %s491 = sand.u32 %s88, 1
        %s492 = scalar_lea.vmem [#allocation8], %s491
        // Predicated region
        $region69: #{tpu_custom_call.1} parent=59 // pred_check
          %p493 = pneg %p101
        $region70: #{tpu_custom_call.1} parent=59 // pred_check_branch
          %495 = sbr.rel (%p493) target = $region72
        $region71: #{tpu_custom_call.1} parent=59 // pred_region
          %496 = dma.done %s490, 16
        $region72: #{tpu_custom_call.1} parent=59 // pred_fallthru
          _
        %s497 = sand.u32 %s33, 1
        %s498 = scalar_lea.sflag [#allocation10], %s497
        %s499 = sand.u32 %s114, 1
        %s500 = smul.addr %s499, 64
        %s501 = scalar_lea.vmem [#allocation9], %s500
        // Predicated region
        $region73: #{tpu_custom_call.1} parent=59 // pred_check
          %p502 = pneg %p127
        $region74: #{tpu_custom_call.1} parent=59 // pred_check_branch
          %504 = sbr.rel (%p502) target = $region76
        $region75: #{tpu_custom_call.1} parent=59 // pred_region
          %505 = dma.done %s498, 1024
        $region76: #{tpu_custom_call.1} parent=59 // pred_fallthru
          _
        %s506 = sand.u32 %s33, 1
        %s507 = scalar_lea.sflag [#allocation10], %s506
        %s508 = sand.u32 %s140, 1
        %s509 = smul.addr %s508, 8
        %s510 = scalar_lea.vmem [#allocation11], %s509
        // Predicated region
        $region77: #{tpu_custom_call.1} parent=59 // pred_check
          %p511 = pneg %p153
        $region78: #{tpu_custom_call.1} parent=59 // pred_check_branch
          %513 = sbr.rel (%p511) target = $region80
        $region79: #{tpu_custom_call.1} parent=59 // pred_region
          %514 = dma.done %s507, 128
        $region80: #{tpu_custom_call.1} parent=59 // pred_fallthru
          _
        %s515 = sand.u32 %s33, 1
        %s516 = scalar_lea.sflag [#allocation13], %s515
        %s517 = sand.u32 %s166, 1
        %s518 = smul.addr %s517, 128
        %s519 = scalar_lea.vmem [#allocation12], %s518
        // Predicated region
        $region81: #{tpu_custom_call.1} parent=59 // pred_check
          %p520 = pneg %p179
        $region82: #{tpu_custom_call.1} parent=59 // pred_check_branch
          %522 = sbr.rel (%p520) target = $region84
        $region83: #{tpu_custom_call.1} parent=59 // pred_region
          %523 = dma.done %s516, 2048
        $region84: #{tpu_custom_call.1} parent=59 // pred_fallthru
          _
        %s524 = sand.u32 %s33, 1
        %s525 = scalar_lea.sflag [#allocation13], %s524
        %s526 = sand.u32 %s218, 1
        %s527 = smul.addr %s526, 128
        %s528 = scalar_lea.vmem [#allocation14], %s527
        // Predicated region
        $region85: #{tpu_custom_call.1} parent=59 // pred_check
          %p529 = pneg %p231
        $region86: #{tpu_custom_call.1} parent=59 // pred_check_branch
          %531 = sbr.rel (%p529) target = $region88
        $region87: #{tpu_custom_call.1} parent=59 // pred_region
          %532 = dma.done %s525, 2048
        $region88: #{tpu_custom_call.1} parent=59 // pred_fallthru
          _
        // Predicated region
        $region89: #{tpu_custom_call.1} parent=59 // pred_check
          %p533 = pneg %p252
        $region90: #{tpu_custom_call.1} parent=59 // pred_check_branch
          %535 = sbr.rel (%p533) target = $region92
        $region91: #{tpu_custom_call.1} parent=59 // pred_region
          %536 = dma.done [#allocation16], 4096
        $region92: #{tpu_custom_call.1} parent=59 // pred_fallthru
          _
        %p537 = pneg %p49
        %p538 = pneg %p46
        %s539 = sand.u32 %s33, 1
        %s540 = scalar_lea.sflag [#allocation7], %s539
        %s541 = sand.u32 %s62, 1
        %s542 = smul.addr %s541, 64
        %s543 = scalar_lea.vmem [#allocation6], %s542
        %p544 = pneg %p75
        %p545 = pneg %p72
        %s546 = sand.u32 %s33, 1
        %s547 = scalar_lea.sflag [#allocation7], %s546
        %s548 = sand.u32 %s88, 1
        %s549 = scalar_lea.vmem [#allocation8], %s548
        %p550 = pneg %p101
        %p551 = pneg %p98
        %s552 = sand.u32 %s33, 1
        %s553 = scalar_lea.sflag [#allocation10], %s552
        %s554 = sand.u32 %s114, 1
        %s555 = smul.addr %s554, 64
        %s556 = scalar_lea.vmem [#allocation9], %s555
        %p557 = pneg %p127
        %p558 = pneg %p124
        %s559 = sand.u32 %s33, 1
        %s560 = scalar_lea.sflag [#allocation10], %s559
        %s561 = sand.u32 %s140, 1
        %s562 = smul.addr %s561, 8
        %s563 = scalar_lea.vmem [#allocation11], %s562
        %p564 = pneg %p153
        %p565 = pneg %p150
        %s566 = sand.u32 %s33, 1
        %s567 = scalar_lea.sflag [#allocation13], %s566
        %s568 = sand.u32 %s166, 1
        %s569 = smul.addr %s568, 128
        %s570 = scalar_lea.vmem [#allocation12], %s569
        %p571 = pneg %p179
        %p572 = pneg %p176
        %p573 = scmp.lt.s32.totalorder %s33, 2
        %s574 = scalar_select %p573, %s33, 2
        %s575 = smul.addr %s574, 2
        %s576 = scalar_lea.vmem %s6, %s575
        %p577 = pneg %p205
        %p578 = pneg %p202
        %s579 = sand.u32 %s33, 1
        %s580 = scalar_lea.sflag [#allocation13], %s579
        %s581 = sand.u32 %s218, 1
        %s582 = smul.addr %s581, 128
        %s583 = scalar_lea.vmem [#allocation14], %s582
        %p584 = pneg %p231
        %p585 = pneg %p228
        %p586 = pneg %p252
        %p587 = pneg %p249
        %p588 = pneg %p273
        %p589 = pneg %p270
        %p590 = pneg %p294
        %p591 = pneg %p291
        %p592 = scmp.lt.s32.totalorder %s33, 2
        %s593 = scalar_select %p592, %s33, 2
        %s594 = smul.addr %s593, 2
        %s595 = scalar_lea.vmem %s6, %s594
        %p597 = scmp.eq.s32.totalorder %s33, 0
        // Predicated region
        $region93: #{tpu_custom_call.1} parent=59 // pred_check
          %p598 = pneg %p597
        $region94: #{tpu_custom_call.1} parent=59 // pred_check_branch
          %600 = sbr.rel (%p598) target = $region96
        $region95: #{tpu_custom_call.1} parent=59 // pred_region
          %v601 = vld [vmem:[#allocation3] sm:$0x1]
          %602 = vst [vmem:[#allocation2] sm:$0x1] %v601
        $region96: #{tpu_custom_call.1} parent=59 // pred_fallthru
          _
        %v603 = vld [vmem:[#allocation2] sm:$0x1]
        %v604 = vld [vmem:[%s510] sm:$0xff]
        %v605 = vpack.c.bf16 %v603, %v603
        %v606 = vld [vmem:[%s484] sm:$0xf]
        %v607 = vld [vmem:[%s484 + $0x4] sm:$0xf]
        %v608 = vld [vmem:[%s484 + $0x8] sm:$0xf]
        %v609 = vld [vmem:[%s484 + $0xc] sm:$0xf]
        %v610 = vld [vmem:[%s484 + $0x10] sm:$0xf]
        %v611 = vld [vmem:[%s484 + $0x14] sm:$0xf]
        %v612 = vld [vmem:[%s484 + $0x18] sm:$0xf]
        %v613 = vld [vmem:[%s484 + $0x1c] sm:$0xf]
        %v614 = vld [vmem:[%s484 + $0x20] sm:$0xf]
        %v615 = vld [vmem:[%s484 + $0x24] sm:$0xf]
        %v616 = vld [vmem:[%s484 + $0x28] sm:$0xf]
        %v617 = vld [vmem:[%s484 + $0x2c] sm:$0xf]
        %v618 = vld [vmem:[%s484 + $0x30] sm:$0xf]
        %v619 = vld [vmem:[%s484 + $0x34] sm:$0xf]
        %v620 = vld [vmem:[%s484 + $0x38] sm:$0xf]
        %v621 = vld [vmem:[%s484 + $0x3c] sm:$0xf]
        %v622 = vld [vmem:[%s492] sm:$0x1]
        %v639 = vunpack.c.l.b16 %v606
        %v640 = vunpack.c.l.b16 %v607
        %v641 = vunpack.c.l.b16 %v608
        %v642 = vunpack.c.l.b16 %v609
        %v643 = vunpack.c.l.b16 %v610
        %v644 = vunpack.c.l.b16 %v611
        %v645 = vunpack.c.l.b16 %v612
        %v646 = vunpack.c.l.b16 %v613
        %v647 = vunpack.c.l.b16 %v614
        %v648 = vunpack.c.l.b16 %v615
        %v649 = vunpack.c.l.b16 %v616
        %v650 = vunpack.c.l.b16 %v617
        %v651 = vunpack.c.l.b16 %v618
        %v652 = vunpack.c.l.b16 %v619
        %v653 = vunpack.c.l.b16 %v620
        %v654 = vunpack.c.l.b16 %v621
        %v655 = vpack.c.b16 %v640, %v639
        %v656 = vpack.c.b16 %v642, %v641
        %v657 = vpack.c.b16 %v644, %v643
        %v658 = vpack.c.b16 %v646, %v645
        %v659 = vpack.c.b16 %v648, %v647
        %v660 = vpack.c.b16 %v650, %v649
        %v661 = vpack.c.b16 %v652, %v651
        %v662 = vpack.c.b16 %v654, %v653
        %671 = vmatprep.subr.bf16.mxu0 0
        %672 = vmatpush1.bf16.msra.mxu0 %v655
        %673 = vmatprep.subr.bf16.mxu0 0
        %674 = vmatpush1.bf16.msra.mxu0 %v656
        %675 = vmatprep.subr.bf16.mxu0 0
        %676 = vmatpush1.bf16.msra.mxu0 %v657
        %677 = vmatprep.subr.bf16.mxu0 0
        %678 = vmatpush1.bf16.msra.mxu0 %v658
        %679 = vmatprep.subr.bf16.mxu0 0
        %680 = vmatpush1.bf16.msra.mxu0 %v659
        %681 = vmatprep.subr.bf16.mxu0 0
        %682 = vmatpush1.bf16.msra.mxu0 %v660
        %683 = vmatprep.subr.bf16.mxu0 0
        %684 = vmatpush1.bf16.msra.mxu0 %v661
        %685 = vmatprep.subr.bf16.mxu0 0
        %686 = vmatpush1.bf16.msra.mxu0 %v662
        %687 = vmatprep.subr.bf16.mxu0 0
        %688 = vmatpush1.bf16.msra.mxu0 0
        %689 = vmatprep.subr.bf16.mxu0 0
        %690 = vmatpush1.bf16.msra.mxu0 0
        %691 = vmatprep.subr.bf16.mxu0 0
        %692 = vmatpush1.bf16.msra.mxu0 0
        %693 = vmatprep.subr.bf16.mxu0 0
        %694 = vmatpush1.bf16.msra.mxu0 0
        %695 = vmatprep.subr.bf16.mxu0 0
        %696 = vmatpush1.bf16.msra.mxu0 0
        %697 = vmatprep.subr.bf16.mxu0 0
        %698 = vmatpush1.bf16.msra.mxu0 0
        %699 = vmatprep.subr.bf16.mxu0 0
        %700 = vmatpush1.bf16.msra.mxu0 0
        %701 = vmatprep.subr.bf16.mxu0 0
        %702 = vmatpush1.bf16.msra.mxu0 0
        %703 = vmatprep.mubr.bf16.mxu0 0
        %704 = vmatmul.mubr.bf16.gmra.mrb[0].mxu0 %v605
        %v705 = vpop.f32.mrb[0].mxu0
        %v706 = vadd.f32 %v622, %v705
        %v707 = vpop.f32.mrb[0].mxu0
        %v708 = vpop.f32.mrb[0].mxu0
        %v709 = vpop.f32.mrb[0].mxu0
        %710 = vdwg.mxu0
        %v711 = vpack.c.bf16 %v706, %v706
        %v712 = vld [vmem:[%s501] sm:$0xf]
        %v713 = vld [vmem:[%s501 + $0x4] sm:$0xf]
        %v714 = vld [vmem:[%s501 + $0x8] sm:$0xf]
        %v715 = vld [vmem:[%s501 + $0xc] sm:$0xf]
        %v716 = vld [vmem:[%s501 + $0x10] sm:$0xf]
        %v717 = vld [vmem:[%s501 + $0x14] sm:$0xf]
        %v718 = vld [vmem:[%s501 + $0x18] sm:$0xf]
        %v719 = vld [vmem:[%s501 + $0x1c] sm:$0xf]
        %v720 = vld [vmem:[%s501 + $0x20] sm:$0xf]
        %v721 = vld [vmem:[%s501 + $0x24] sm:$0xf]
        %v722 = vld [vmem:[%s501 + $0x28] sm:$0xf]
        %v723 = vld [vmem:[%s501 + $0x2c] sm:$0xf]
        %v724 = vld [vmem:[%s501 + $0x30] sm:$0xf]
        %v725 = vld [vmem:[%s501 + $0x34] sm:$0xf]
        %v726 = vld [vmem:[%s501 + $0x38] sm:$0xf]
        %v727 = vld [vmem:[%s501 + $0x3c] sm:$0xf]
        %v744 = vunpack.c.l.b16 %v712
        %v745 = vunpack.c.l.b16 %v713
        %v746 = vunpack.c.l.b16 %v714
        %v747 = vunpack.c.l.b16 %v715
        %v748 = vunpack.c.l.b16 %v716
        %v749 = vunpack.c.l.b16 %v717
        %v750 = vunpack.c.l.b16 %v718
        %v751 = vunpack.c.l.b16 %v719
        %v752 = vunpack.c.l.b16 %v720
        %v753 = vunpack.c.l.b16 %v721
        %v754 = vunpack.c.l.b16 %v722
        %v755 = vunpack.c.l.b16 %v723
        %v756 = vunpack.c.l.b16 %v724
        %v757 = vunpack.c.l.b16 %v725
        %v758 = vunpack.c.l.b16 %v726
        %v759 = vunpack.c.l.b16 %v727
        %v760 = vpack.c.b16 %v745, %v744
        %v761 = vpack.c.b16 %v747, %v746
        %v762 = vpack.c.b16 %v749, %v748
        %v763 = vpack.c.b16 %v751, %v750
        %v764 = vpack.c.b16 %v753, %v752
        %v765 = vpack.c.b16 %v755, %v754
        %v766 = vpack.c.b16 %v757, %v756
        %v767 = vpack.c.b16 %v759, %v758
        %776 = vmatprep.subr.bf16.mxu0 0
        %777 = vmatpush1.bf16.msra.mxu0 %v760
        %778 = vmatprep.subr.bf16.mxu0 0
        %779 = vmatpush1.bf16.msra.mxu0 %v761
        %780 = vmatprep.subr.bf16.mxu0 0
        %781 = vmatpush1.bf16.msra.mxu0 %v762
        %782 = vmatprep.subr.bf16.mxu0 0
        %783 = vmatpush1.bf16.msra.mxu0 %v763
        %784 = vmatprep.subr.bf16.mxu0 0
        %785 = vmatpush1.bf16.msra.mxu0 %v764
        %786 = vmatprep.subr.bf16.mxu0 0
        %787 = vmatpush1.bf16.msra.mxu0 %v765
        %788 = vmatprep.subr.bf16.mxu0 0
        %789 = vmatpush1.bf16.msra.mxu0 %v766
        %790 = vmatprep.subr.bf16.mxu0 0
        %791 = vmatpush1.bf16.msra.mxu0 %v767
        %792 = vmatprep.subr.bf16.mxu0 0
        %793 = vmatpush1.bf16.msra.mxu0 0
        %794 = vmatprep.subr.bf16.mxu0 0
        %795 = vmatpush1.bf16.msra.mxu0 0
        %796 = vmatprep.subr.bf16.mxu0 0
        %797 = vmatpush1.bf16.msra.mxu0 0
        %798 = vmatprep.subr.bf16.mxu0 0
        %799 = vmatpush1.bf16.msra.mxu0 0
        %800 = vmatprep.subr.bf16.mxu0 0
        %801 = vmatpush1.bf16.msra.mxu0 0
        %802 = vmatprep.subr.bf16.mxu0 0
        %803 = vmatpush1.bf16.msra.mxu0 0
        %804 = vmatprep.subr.bf16.mxu0 0
        %805 = vmatpush1.bf16.msra.mxu0 0
        %806 = vmatprep.subr.bf16.mxu0 0
        %807 = vmatpush1.bf16.msra.mxu0 0
        %808 = vmatprep.mubr.bf16.mxu0 0
        %809 = vmatmul.mubr.bf16.gmra.mrb[0].mxu0 %v711
        %v810 = vpop.f32.mrb[0].mxu0
        %v811 = vadd.f32 %v604, %v810
        %v812 = vpop.f32.mrb[0].mxu0
        %v813 = vpop.f32.mrb[0].mxu0
        %v814 = vpop.f32.mrb[0].mxu0
        %815 = vdwg.mxu0
        %v816 = vadd.f32 %v603, %v811
        %vm817 = vcmask 1040384
        %v818 = vsel %vm817, %v816, 0.0
        %819 = vadd.xlane.f32.xlu0 %v818
        %v820 = vpop.xlane.xlu0 %819
        %v821 = vrcp.pop 128.0
        %v822 = vmul.f32 %v820, %v821
        %v823 = vsub.f32 %v816, %v822
        %v824 = vmul.f32 %v823, %v823
        %v825 = vsel %vm817, %v824, 0.0
        %826 = vadd.xlane.f32.xlu0 %v825
        %v827 = vpop.xlane.xlu0 %826
        %v828 = vmul.f32 %v827, %v821
        %v829 = vadd.f32 %v828, 1e-05
        %v830 = vrsqrt.pop %v829
        %v831 = vmul.f32 %v823, %v830
        %v834 = vunpack.c.l.s4 1966171168
        %v835 = vunpack.c.0.s8 %v834
        %v836 = vlaneseq
        %v837 = vshrl.u32 %v836, 7
        %v838 = vsub.s32 %v835, %v837
        %v839 = vrot.slane %v604, %v838
        %v840 = vcombine.high %v839, %v839
        %v842 = vunpack.c.l.s4 1966171168
        %v843 = vunpack.c.0.s8 %v842
        %v844 = vlaneseq
        %v845 = vshrl.u32 %v844, 7
        %v846 = vsub.s32 %v843, %v845
        %v847 = vrot.slane %v839, %v846
        %v849 = vunpack.c.l.s4 1966171168
        %v850 = vunpack.c.0.s8 %v849
        %v851 = vlaneseq
        %v852 = vshrl.u32 %v851, 7
        %v853 = vsub.s32 %v850, %v852
        %v854 = vrot.slane %v840, %v853
        %v856 = vmul.f32 %v831, %v854
        %v857 = vcombine.high %v847, %v847
        %v859 = vadd.f32 %v856, %v857
        %v860 = vpack.c.bf16 %v859, %v859
        %v861 = vld [vmem:[%s519] sm:$0xff]
        %v862 = vld [vmem:[%s519 + $0x8] sm:$0xff]
        %v863 = vld [vmem:[%s519 + $0x10] sm:$0xff]
        %v864 = vld [vmem:[%s519 + $0x18] sm:$0xff]
        %v865 = vld [vmem:[%s519 + $0x20] sm:$0xff]
        %v866 = vld [vmem:[%s519 + $0x28] sm:$0xff]
        %v867 = vld [vmem:[%s519 + $0x30] sm:$0xff]
        %v868 = vld [vmem:[%s519 + $0x38] sm:$0xff]
        %v869 = vld [vmem:[%s519 + $0x40] sm:$0xff]
        %v870 = vld [vmem:[%s519 + $0x48] sm:$0xff]
        %v871 = vld [vmem:[%s519 + $0x50] sm:$0xff]
        %v872 = vld [vmem:[%s519 + $0x58] sm:$0xff]
        %v873 = vld [vmem:[%s519 + $0x60] sm:$0xff]
        %v874 = vld [vmem:[%s519 + $0x68] sm:$0xff]
        %v875 = vld [vmem:[%s519 + $0x70] sm:$0xff]
        %v876 = vld [vmem:[%s519 + $0x78] sm:$0xff]
        %v877 = vld [vmem:[%s595] sm:$0x3]
        %v894 = vunpack.c.l.b16 %v861
        %v895 = vunpack.c.h.b16 %v861
        %v896 = vunpack.c.l.b16 %v862
        %v897 = vunpack.c.h.b16 %v862
        %v898 = vunpack.c.l.b16 %v863
        %v899 = vunpack.c.h.b16 %v863
        %v900 = vunpack.c.l.b16 %v864
        %v901 = vunpack.c.h.b16 %v864
        %v902 = vunpack.c.l.b16 %v865
        %v903 = vunpack.c.h.b16 %v865
        %v904 = vunpack.c.l.b16 %v866
        %v905 = vunpack.c.h.b16 %v866
        %v906 = vunpack.c.l.b16 %v867
        %v907 = vunpack.c.h.b16 %v867
        %v908 = vunpack.c.l.b16 %v868
        %v909 = vunpack.c.h.b16 %v868
        %v910 = vunpack.c.l.b16 %v869
        %v911 = vunpack.c.h.b16 %v869
        %v912 = vunpack.c.l.b16 %v870
        %v913 = vunpack.c.h.b16 %v870
        %v914 = vunpack.c.l.b16 %v871
        %v915 = vunpack.c.h.b16 %v871
        %v916 = vunpack.c.l.b16 %v872
        %v917 = vunpack.c.h.b16 %v872
        %v918 = vunpack.c.l.b16 %v873
        %v919 = vunpack.c.h.b16 %v873
        %v920 = vunpack.c.l.b16 %v874
        %v921 = vunpack.c.h.b16 %v874
        %v922 = vunpack.c.l.b16 %v875
        %v923 = vunpack.c.h.b16 %v875
        %v924 = vunpack.c.l.b16 %v876
        %v925 = vunpack.c.h.b16 %v876
        %v926 = vpack.c.b16 %v896, %v894
        %v927 = vpack.c.b16 %v897, %v895
        %v928 = vpack.c.b16 %v900, %v898
        %v929 = vpack.c.b16 %v901, %v899
        %v930 = vpack.c.b16 %v904, %v902
        %v931 = vpack.c.b16 %v905, %v903
        %v932 = vpack.c.b16 %v908, %v906
        %v933 = vpack.c.b16 %v909, %v907
        %v934 = vpack.c.b16 %v912, %v910
        %v935 = vpack.c.b16 %v913, %v911
        %v936 = vpack.c.b16 %v916, %v914
        %v937 = vpack.c.b16 %v917, %v915
        %v938 = vpack.c.b16 %v920, %v918
        %v939 = vpack.c.b16 %v921, %v919
        %v940 = vpack.c.b16 %v924, %v922
        %v941 = vpack.c.b16 %v925, %v923
        %v959 = vlaneseq
        %v960 = vshrl.u32 %v959, 7
        %v961 = vsub.s32 0, %v960
        %v962 = vrot.slane %v877, %v961
        %v963 = vlaneseq
        %v964 = vshrl.u32 %v963, 7
        %v965 = vsub.s32 1, %v964
        %v966 = vrot.slane %v877, %v965
        %969 = vmatprep.subr.bf16.mxu0 %v927
        %970 = vmatpush1.bf16.msra.mxu0 %v926
        %971 = vmatprep.subr.bf16.mxu0 %v929
        %972 = vmatpush1.bf16.msra.mxu0 %v928
        %973 = vmatprep.subr.bf16.mxu0 %v931
        %974 = vmatpush1.bf16.msra.mxu0 %v930
        %975 = vmatprep.subr.bf16.mxu0 %v933
        %976 = vmatpush1.bf16.msra.mxu0 %v932
        %977 = vmatprep.subr.bf16.mxu0 %v935
        %978 = vmatpush1.bf16.msra.mxu0 %v934
        %979 = vmatprep.subr.bf16.mxu0 %v937
        %980 = vmatpush1.bf16.msra.mxu0 %v936
        %981 = vmatprep.subr.bf16.mxu0 %v939
        %982 = vmatpush1.bf16.msra.mxu0 %v938
        %983 = vmatprep.subr.bf16.mxu0 %v941
        %984 = vmatpush1.bf16.msra.mxu0 %v940
        %985 = vmatprep.subr.bf16.mxu0 0
        %986 = vmatpush1.bf16.msra.mxu0 0
        %987 = vmatprep.subr.bf16.mxu0 0
        %988 = vmatpush1.bf16.msra.mxu0 0
        %989 = vmatprep.subr.bf16.mxu0 0
        %990 = vmatpush1.bf16.msra.mxu0 0
        %991 = vmatprep.subr.bf16.mxu0 0
        %992 = vmatpush1.bf16.msra.mxu0 0
        %993 = vmatprep.subr.bf16.mxu0 0
        %994 = vmatpush1.bf16.msra.mxu0 0
        %995 = vmatprep.subr.bf16.mxu0 0
        %996 = vmatpush1.bf16.msra.mxu0 0
        %997 = vmatprep.subr.bf16.mxu0 0
        %998 = vmatpush1.bf16.msra.mxu0 0
        %999 = vmatprep.subr.bf16.mxu0 0
        %1000 = vmatpush1.bf16.msra.mxu0 0
        %1001 = vmatprep.mubr.bf16.mxu0 0
        %1002 = vmatmul.mubr.bf16.gmra.mrb[0].mxu0 %v860
        %v1003 = vpop.f32.mrb[0].mxu0
        %v1004 = vadd.f32 %v962, %v1003
        %v1005 = vpop.f32.mrb[0].mxu0
        %v1006 = vadd.f32 %v966, %v1005
        %v1007 = vpop.f32.mrb[0].mxu0
        %v1008 = vpop.f32.mrb[0].mxu0
        %1009 = vdwg.mxu0
        %v1010 = vmax.f32 %v1004, 0.0
        %v1011 = vmax.f32 %v1006, 0.0
        %v1012 = vpack.c.bf16 %v1010, %v1010
        %v1013 = vpack.c.bf16 %v1011, %v1011
        %v1014 = vld [vmem:[%s528] sm:$0xf]
        %v1015 = vld [vmem:[%s528 + $0x4] sm:$0xf]
        %v1016 = vld [vmem:[%s528 + $0x8] sm:$0xf]
        %v1017 = vld [vmem:[%s528 + $0xc] sm:$0xf]
        %v1018 = vld [vmem:[%s528 + $0x10] sm:$0xf]
        %v1019 = vld [vmem:[%s528 + $0x14] sm:$0xf]
        %v1020 = vld [vmem:[%s528 + $0x18] sm:$0xf]
        %v1021 = vld [vmem:[%s528 + $0x1c] sm:$0xf]
        %v1022 = vld [vmem:[%s528 + $0x20] sm:$0xf]
        %v1023 = vld [vmem:[%s528 + $0x24] sm:$0xf]
        %v1024 = vld [vmem:[%s528 + $0x28] sm:$0xf]
        %v1025 = vld [vmem:[%s528 + $0x2c] sm:$0xf]
        %v1026 = vld [vmem:[%s528 + $0x30] sm:$0xf]
        %v1027 = vld [vmem:[%s528 + $0x34] sm:$0xf]
        %v1028 = vld [vmem:[%s528 + $0x38] sm:$0xf]
        %v1029 = vld [vmem:[%s528 + $0x3c] sm:$0xf]
        %v1030 = vld [vmem:[%s528 + $0x40] sm:$0xf]
        %v1031 = vld [vmem:[%s528 + $0x44] sm:$0xf]
        %v1032 = vld [vmem:[%s528 + $0x48] sm:$0xf]
        %v1033 = vld [vmem:[%s528 + $0x4c] sm:$0xf]
        %v1034 = vld [vmem:[%s528 + $0x50] sm:$0xf]
        %v1035 = vld [vmem:[%s528 + $0x54] sm:$0xf]
        %v1036 = vld [vmem:[%s528 + $0x58] sm:$0xf]
        %v1037 = vld [vmem:[%s528 + $0x5c] sm:$0xf]
        %v1038 = vld [vmem:[%s528 + $0x60] sm:$0xf]
        %v1039 = vld [vmem:[%s528 + $0x64] sm:$0xf]
        %v1040 = vld [vmem:[%s528 + $0x68] sm:$0xf]
        %v1041 = vld [vmem:[%s528 + $0x6c] sm:$0xf]
        %v1042 = vld [vmem:[%s528 + $0x70] sm:$0xf]
        %v1043 = vld [vmem:[%s528 + $0x74] sm:$0xf]
        %v1044 = vld [vmem:[%s528 + $0x78] sm:$0xf]
        %v1045 = vld [vmem:[%s528 + $0x7c] sm:$0xf]
        %v1078 = vunpack.c.l.b16 %v1014
        %v1079 = vunpack.c.l.b16 %v1015
        %v1080 = vunpack.c.l.b16 %v1016
        %v1081 = vunpack.c.l.b16 %v1017
        %v1082 = vunpack.c.l.b16 %v1018
        %v1083 = vunpack.c.l.b16 %v1019
        %v1084 = vunpack.c.l.b16 %v1020
        %v1085 = vunpack.c.l.b16 %v1021
        %v1086 = vunpack.c.l.b16 %v1022
        %v1087 = vunpack.c.l.b16 %v1023
        %v1088 = vunpack.c.l.b16 %v1024
        %v1089 = vunpack.c.l.b16 %v1025
        %v1090 = vunpack.c.l.b16 %v1026
        %v1091 = vunpack.c.l.b16 %v1027
        %v1092 = vunpack.c.l.b16 %v1028
        %v1093 = vunpack.c.l.b16 %v1029
        %v1094 = vunpack.c.l.b16 %v1030
        %v1095 = vunpack.c.l.b16 %v1031
        %v1096 = vunpack.c.l.b16 %v1032
        %v1097 = vunpack.c.l.b16 %v1033
        %v1098 = vunpack.c.l.b16 %v1034
        %v1099 = vunpack.c.l.b16 %v1035
        %v1100 = vunpack.c.l.b16 %v1036
        %v1101 = vunpack.c.l.b16 %v1037
        %v1102 = vunpack.c.l.b16 %v1038
        %v1103 = vunpack.c.l.b16 %v1039
        %v1104 = vunpack.c.l.b16 %v1040
        %v1105 = vunpack.c.l.b16 %v1041
        %v1106 = vunpack.c.l.b16 %v1042
        %v1107 = vunpack.c.l.b16 %v1043
        %v1108 = vunpack.c.l.b16 %v1044
        %v1109 = vunpack.c.l.b16 %v1045
        %v1110 = vpack.c.b16 %v1079, %v1078
        %v1111 = vpack.c.b16 %v1081, %v1080
        %v1112 = vpack.c.b16 %v1083, %v1082
        %v1113 = vpack.c.b16 %v1085, %v1084
        %v1114 = vpack.c.b16 %v1087, %v1086
        %v1115 = vpack.c.b16 %v1089, %v1088
        %v1116 = vpack.c.b16 %v1091, %v1090
        %v1117 = vpack.c.b16 %v1093, %v1092
        %v1118 = vpack.c.b16 %v1095, %v1094
        %v1119 = vpack.c.b16 %v1097, %v1096
        %v1120 = vpack.c.b16 %v1099, %v1098
        %v1121 = vpack.c.b16 %v1101, %v1100
        %v1122 = vpack.c.b16 %v1103, %v1102
        %v1123 = vpack.c.b16 %v1105, %v1104
        %v1124 = vpack.c.b16 %v1107, %v1106
        %v1125 = vpack.c.b16 %v1109, %v1108
        %v1142 = vrot.slane %v604, 3
        %1144 = vmatprep.subr.bf16.mxu0 0
        %1145 = vmatpush1.bf16.msra.mxu0 %v1110
        %1146 = vmatprep.subr.bf16.mxu0 0
        %1147 = vmatpush1.bf16.msra.mxu0 %v1111
        %1148 = vmatprep.subr.bf16.mxu0 0
        %1149 = vmatpush1.bf16.msra.mxu0 %v1112
        %1150 = vmatprep.subr.bf16.mxu0 0
        %1151 = vmatpush1.bf16.msra.mxu0 %v1113
        %1152 = vmatprep.subr.bf16.mxu0 0
        %1153 = vmatpush1.bf16.msra.mxu0 %v1114
        %1154 = vmatprep.subr.bf16.mxu0 0
        %1155 = vmatpush1.bf16.msra.mxu0 %v1115
        %1156 = vmatprep.subr.bf16.mxu0 0
        %1157 = vmatpush1.bf16.msra.mxu0 %v1116
        %1158 = vmatprep.subr.bf16.mxu0 0
        %1159 = vmatpush1.bf16.msra.mxu0 %v1117
        %1160 = vmatprep.subr.bf16.mxu0 0
        %1161 = vmatpush1.bf16.msra.mxu0 %v1118
        %1162 = vmatprep.subr.bf16.mxu0 0
        %1163 = vmatpush1.bf16.msra.mxu0 %v1119
        %1164 = vmatprep.subr.bf16.mxu0 0
        %1165 = vmatpush1.bf16.msra.mxu0 %v1120
        %1166 = vmatprep.subr.bf16.mxu0 0
        %1167 = vmatpush1.bf16.msra.mxu0 %v1121
        %1168 = vmatprep.subr.bf16.mxu0 0
        %1169 = vmatpush1.bf16.msra.mxu0 %v1122
        %1170 = vmatprep.subr.bf16.mxu0 0
        %1171 = vmatpush1.bf16.msra.mxu0 %v1123
        %1172 = vmatprep.subr.bf16.mxu0 0
        %1173 = vmatpush1.bf16.msra.mxu0 %v1124
        %1174 = vmatprep.subr.bf16.mxu0 0
        %1175 = vmatpush1.bf16.msra.mxu0 %v1125
        %1176 = vmatprep.mubr.bf16.mxu0 %v1013
        %1177 = vmatmul.mubr.bf16.gmra.mrb[0].mxu0 %v1012
        %v1178 = vpop.f32.mrb[0].mxu0
        %v1179 = vadd.f32 %v1142, %v1178
        %v1180 = vpop.f32.mrb[0].mxu0
        %v1181 = vpop.f32.mrb[0].mxu0
        %v1182 = vpop.f32.mrb[0].mxu0
        %1183 = vdwg.mxu0
        %v1184 = vadd.f32 %v859, %v1179
        %v1185 = vsel %vm817, %v1184, 0.0
        %1186 = vadd.xlane.f32.xlu0 %v1185
        %v1187 = vpop.xlane.xlu0 %1186
        %v1188 = vmul.f32 %v1187, %v821
        %v1189 = vsub.f32 %v1184, %v1188
        %v1190 = vmul.f32 %v1189, %v1189
        %v1191 = vsel %vm817, %v1190, 0.0
        %1192 = vadd.xlane.f32.xlu0 %v1191
        %v1193 = vpop.xlane.xlu0 %1192
        %v1194 = vmul.f32 %v1193, %v821
        %v1195 = vadd.f32 %v1194, 1e-05
        %v1196 = vrsqrt.pop %v1195
        %v1197 = vmul.f32 %v1189, %v1196
        %v1198 = vcombine.high %v604, %v604
        %v1200 = vunpack.c.l.s4 1966171168
        %v1201 = vunpack.c.0.s8 %v1200
        %v1202 = vlaneseq
        %v1203 = vshrl.u32 %v1202, 7
        %v1204 = vsub.s32 %v1201, %v1203
        %v1205 = vrot.slane %v1198, %v1204
        %v1207 = vunpack.c.l.s4 1966171168
        %v1208 = vunpack.c.0.s8 %v1207
        %v1209 = vlaneseq
        %v1210 = vshrl.u32 %v1209, 7
        %v1211 = vsub.s32 %v1208, %v1210
        %v1212 = vrot.slane %v1205, %v1211
        %v1214 = vmul.f32 %v1197, %v1212
        %v1215 = vcombine.high %v1205, %v1205
        %v1217 = vunpack.c.l.s4 1966171168
        %v1218 = vunpack.c.0.s8 %v1217
        %v1219 = vlaneseq
        %v1220 = vshrl.u32 %v1219, 7
        %v1221 = vsub.s32 %v1218, %v1220
        %v1222 = vrot.slane %v1215, %v1221
        %v1224 = vadd.f32 %v1214, %v1222
        %1225 = vst [vmem:[#allocation2] sm:$0x1] %v1224
        %p1226 = scmp.eq.s32.totalorder %s33, 2
        // Predicated region
        $region97: #{tpu_custom_call.1} parent=59 // pred_check
          %p1227 = pneg %p1226
        $region98: #{tpu_custom_call.1} parent=59 // pred_check_branch
          %1229 = sbr.rel (%p1227) target = $region100
        $region99: #{tpu_custom_call.1} parent=59 // pred_region
          %v1230 = vpack.c.bf16 %v1224, %v1224
          %v1231 = vld [vmem:[#allocation15] sm:$0xff]
          %v1232 = vld [vmem:[#allocation15 + $0x8] sm:$0xff]
          %v1233 = vld [vmem:[#allocation15 + $0x10] sm:$0xff]
          %v1234 = vld [vmem:[#allocation15 + $0x18] sm:$0xff]
          %v1235 = vld [vmem:[#allocation15 + $0x20] sm:$0xff]
          %v1236 = vld [vmem:[#allocation15 + $0x28] sm:$0xff]
          %v1237 = vld [vmem:[#allocation15 + $0x30] sm:$0xff]
          %v1238 = vld [vmem:[#allocation15 + $0x38] sm:$0xff]
          %v1239 = vld [vmem:[#allocation15 + $0x40] sm:$0xff]
          %v1240 = vld [vmem:[#allocation15 + $0x48] sm:$0xff]
          %v1241 = vld [vmem:[#allocation15 + $0x50] sm:$0xff]
          %v1242 = vld [vmem:[#allocation15 + $0x58] sm:$0xff]
          %v1243 = vld [vmem:[#allocation15 + $0x60] sm:$0xff]
          %v1244 = vld [vmem:[#allocation15 + $0x68] sm:$0xff]
          %v1245 = vld [vmem:[#allocation15 + $0x70] sm:$0xff]
          %v1246 = vld [vmem:[#allocation15 + $0x78] sm:$0xff]
          %v1247 = vld [vmem:[#allocation15 + $0x80] sm:$0xff]
          %v1248 = vld [vmem:[#allocation15 + $0x88] sm:$0xff]
          %v1249 = vld [vmem:[#allocation15 + $0x90] sm:$0xff]
          %v1250 = vld [vmem:[#allocation15 + $0x98] sm:$0xff]
          %v1251 = vld [vmem:[#allocation15 + $0xa0] sm:$0xff]
          %v1252 = vld [vmem:[#allocation15 + $0xa8] sm:$0xff]
          %v1253 = vld [vmem:[#allocation15 + $0xb0] sm:$0xff]
          %v1254 = vld [vmem:[#allocation15 + $0xb8] sm:$0xff]
          %v1255 = vld [vmem:[#allocation15 + $0xc0] sm:$0xff]
          %v1256 = vld [vmem:[#allocation15 + $0xc8] sm:$0xff]
          %v1257 = vld [vmem:[#allocation15 + $0xd0] sm:$0xff]
          %v1258 = vld [vmem:[#allocation15 + $0xd8] sm:$0xff]
          %v1259 = vld [vmem:[#allocation15 + $0xe0] sm:$0xff]
          %v1260 = vld [vmem:[#allocation15 + $0xe8] sm:$0xff]
          %v1261 = vld [vmem:[#allocation15 + $0xf0] sm:$0xff]
          %v1262 = vld [vmem:[#allocation15 + $0xf8] sm:$0xff]
          %v1263 = vld [vmem:[%s9] sm:$0xf]
          %v1296 = vunpack.c.l.b16 %v1231
          %v1297 = vunpack.c.h.b16 %v1231
          %v1298 = vunpack.c.l.b16 %v1232
          %v1299 = vunpack.c.h.b16 %v1232
          %v1300 = vunpack.c.l.b16 %v1233
          %v1301 = vunpack.c.h.b16 %v1233
          %v1302 = vunpack.c.l.b16 %v1234
          %v1303 = vunpack.c.h.b16 %v1234
          %v1304 = vunpack.c.l.b16 %v1235
          %v1305 = vunpack.c.h.b16 %v1235
          %v1306 = vunpack.c.l.b16 %v1236
          %v1307 = vunpack.c.h.b16 %v1236
          %v1308 = vunpack.c.l.b16 %v1237
          %v1309 = vunpack.c.h.b16 %v1237
          %v1310 = vunpack.c.l.b16 %v1238
          %v1311 = vunpack.c.h.b16 %v1238
          %v1312 = vunpack.c.l.b16 %v1239
          %v1313 = vunpack.c.h.b16 %v1239
          %v1314 = vunpack.c.l.b16 %v1240
          %v1315 = vunpack.c.h.b16 %v1240
          %v1316 = vunpack.c.l.b16 %v1241
          %v1317 = vunpack.c.h.b16 %v1241
          %v1318 = vunpack.c.l.b16 %v1242
          %v1319 = vunpack.c.h.b16 %v1242
          %v1320 = vunpack.c.l.b16 %v1243
          %v1321 = vunpack.c.h.b16 %v1243
          %v1322 = vunpack.c.l.b16 %v1244
          %v1323 = vunpack.c.h.b16 %v1244
          %v1324 = vunpack.c.l.b16 %v1245
          %v1325 = vunpack.c.h.b16 %v1245
          %v1326 = vunpack.c.l.b16 %v1246
          %v1327 = vunpack.c.h.b16 %v1246
          %v1328 = vunpack.c.l.b16 %v1247
          %v1329 = vunpack.c.h.b16 %v1247
          %v1330 = vunpack.c.l.b16 %v1248
          %v1331 = vunpack.c.h.b16 %v1248
          %v1332 = vunpack.c.l.b16 %v1249
          %v1333 = vunpack.c.h.b16 %v1249
          %v1334 = vunpack.c.l.b16 %v1250
          %v1335 = vunpack.c.h.b16 %v1250
          %v1336 = vunpack.c.l.b16 %v1251
          %v1337 = vunpack.c.h.b16 %v1251
          %v1338 = vunpack.c.l.b16 %v1252
          %v1339 = vunpack.c.h.b16 %v1252
          %v1340 = vunpack.c.l.b16 %v1253
          %v1341 = vunpack.c.h.b16 %v1253
          %v1342 = vunpack.c.l.b16 %v1254
          %v1343 = vunpack.c.h.b16 %v1254
          %v1344 = vunpack.c.l.b16 %v1255
          %v1345 = vunpack.c.h.b16 %v1255
          %v1346 = vunpack.c.l.b16 %v1256
          %v1347 = vunpack.c.h.b16 %v1256
          %v1348 = vunpack.c.l.b16 %v1257
          %v1349 = vunpack.c.h.b16 %v1257
          %v1350 = vunpack.c.l.b16 %v1258
          %v1351 = vunpack.c.h.b16 %v1258
          %v1352 = vunpack.c.l.b16 %v1259
          %v1353 = vunpack.c.h.b16 %v1259
          %v1354 = vunpack.c.l.b16 %v1260
          %v1355 = vunpack.c.h.b16 %v1260
          %v1356 = vunpack.c.l.b16 %v1261
          %v1357 = vunpack.c.h.b16 %v1261
          %v1358 = vunpack.c.l.b16 %v1262
          %v1359 = vunpack.c.h.b16 %v1262
          %v1360 = vpack.c.b16 %v1300, %v1296
          %v1361 = vpack.c.b16 %v1301, %v1297
          %v1362 = vpack.c.b16 %v1302, %v1298
          %v1363 = vpack.c.b16 %v1303, %v1299
          %v1364 = vpack.c.b16 %v1308, %v1304
          %v1365 = vpack.c.b16 %v1309, %v1305
          %v1366 = vpack.c.b16 %v1310, %v1306
          %v1367 = vpack.c.b16 %v1311, %v1307
          %v1368 = vpack.c.b16 %v1316, %v1312
          %v1369 = vpack.c.b16 %v1317, %v1313
          %v1370 = vpack.c.b16 %v1318, %v1314
          %v1371 = vpack.c.b16 %v1319, %v1315
          %v1372 = vpack.c.b16 %v1324, %v1320
          %v1373 = vpack.c.b16 %v1325, %v1321
          %v1374 = vpack.c.b16 %v1326, %v1322
          %v1375 = vpack.c.b16 %v1327, %v1323
          %v1376 = vpack.c.b16 %v1332, %v1328
          %v1377 = vpack.c.b16 %v1333, %v1329
          %v1378 = vpack.c.b16 %v1334, %v1330
          %v1379 = vpack.c.b16 %v1335, %v1331
          %v1380 = vpack.c.b16 %v1340, %v1336
          %v1381 = vpack.c.b16 %v1341, %v1337
          %v1382 = vpack.c.b16 %v1342, %v1338
          %v1383 = vpack.c.b16 %v1343, %v1339
          %v1384 = vpack.c.b16 %v1348, %v1344
          %v1385 = vpack.c.b16 %v1349, %v1345
          %v1386 = vpack.c.b16 %v1350, %v1346
          %v1387 = vpack.c.b16 %v1351, %v1347
          %v1388 = vpack.c.b16 %v1356, %v1352
          %v1389 = vpack.c.b16 %v1357, %v1353
          %v1390 = vpack.c.b16 %v1358, %v1354
          %v1391 = vpack.c.b16 %v1359, %v1355
          %v1425 = vlaneseq
          %v1426 = vshrl.u32 %v1425, 7
          %v1427 = vsub.s32 0, %v1426
          %v1428 = vrot.slane %v1263, %v1427
          %v1429 = vlaneseq
          %v1430 = vshrl.u32 %v1429, 7
          %v1431 = vsub.s32 1, %v1430
          %v1432 = vrot.slane %v1263, %v1431
          %v1433 = vlaneseq
          %v1434 = vshrl.u32 %v1433, 7
          %v1435 = vsub.s32 2, %v1434
          %v1436 = vrot.slane %v1263, %v1435
          %v1437 = vlaneseq
          %v1438 = vshrl.u32 %v1437, 7
          %v1439 = vsub.s32 3, %v1438
          %v1440 = vrot.slane %v1263, %v1439
          %1445 = vmatprep.subr.bf16.mxu0 %v1361
          %1446 = vmatpush1.bf16.msra.mxu0 %v1360
          %1447 = vmatprep.subr.bf16.mxu0 %v1365
          %1448 = vmatpush1.bf16.msra.mxu0 %v1364
          %1449 = vmatprep.subr.bf16.mxu0 %v1369
          %1450 = vmatpush1.bf16.msra.mxu0 %v1368
          %1451 = vmatprep.subr.bf16.mxu0 %v1373
          %1452 = vmatpush1.bf16.msra.mxu0 %v1372
          %1453 = vmatprep.subr.bf16.mxu0 %v1377
          %1454 = vmatpush1.bf16.msra.mxu0 %v1376
          %1455 = vmatprep.subr.bf16.mxu0 %v1381
          %1456 = vmatpush1.bf16.msra.mxu0 %v1380
          %1457 = vmatprep.subr.bf16.mxu0 %v1385
          %1458 = vmatpush1.bf16.msra.mxu0 %v1384
          %1459 = vmatprep.subr.bf16.mxu0 %v1389
          %1460 = vmatpush1.bf16.msra.mxu0 %v1388
          %1461 = vmatprep.subr.bf16.mxu0 0
          %1462 = vmatpush1.bf16.msra.mxu0 0
          %1463 = vmatprep.subr.bf16.mxu0 0
          %1464 = vmatpush1.bf16.msra.mxu0 0
          %1465 = vmatprep.subr.bf16.mxu0 0
          %1466 = vmatpush1.bf16.msra.mxu0 0
          %1467 = vmatprep.subr.bf16.mxu0 0
          %1468 = vmatpush1.bf16.msra.mxu0 0
          %1469 = vmatprep.subr.bf16.mxu0 0
          %1470 = vmatpush1.bf16.msra.mxu0 0
          %1471 = vmatprep.subr.bf16.mxu0 0
          %1472 = vmatpush1.bf16.msra.mxu0 0
          %1473 = vmatprep.subr.bf16.mxu0 0
          %1474 = vmatpush1.bf16.msra.mxu0 0
          %1475 = vmatprep.subr.bf16.mxu0 0
          %1476 = vmatpush1.bf16.msra.mxu0 0
          %1477 = vmatprep.mubr.bf16.mxu0 0
          %1478 = vmatmul.mubr.bf16.gmra.mrb[0].mxu0 %v1230
          %v1479 = vpop.f32.mrb[0].mxu0
          %v1480 = vadd.f32 %v1428, %v1479
          %v1481 = vpop.f32.mrb[0].mxu0
          %v1482 = vadd.f32 %v1432, %v1481
          %v1483 = vpop.f32.mrb[0].mxu0
          %v1484 = vpop.f32.mrb[0].mxu0
          %1485 = vdwg.mxu0
          %1486 = vmatprep.subr.bf16.mxu0 %v1363
          %1487 = vmatpush1.bf16.msra.mxu0 %v1362
          %1488 = vmatprep.subr.bf16.mxu0 %v1367
          %1489 = vmatpush1.bf16.msra.mxu0 %v1366
          %1490 = vmatprep.subr.bf16.mxu0 %v1371
          %1491 = vmatpush1.bf16.msra.mxu0 %v1370
          %1492 = vmatprep.subr.bf16.mxu0 %v1375
          %1493 = vmatpush1.bf16.msra.mxu0 %v1374
          %1494 = vmatprep.subr.bf16.mxu0 %v1379
          %1495 = vmatpush1.bf16.msra.mxu0 %v1378
          %1496 = vmatprep.subr.bf16.mxu0 %v1383
          %1497 = vmatpush1.bf16.msra.mxu0 %v1382
          %1498 = vmatprep.subr.bf16.mxu0 %v1387
          %1499 = vmatpush1.bf16.msra.mxu0 %v1386
          %1500 = vmatprep.subr.bf16.mxu0 %v1391
          %1501 = vmatpush1.bf16.msra.mxu0 %v1390
          %1502 = vmatprep.subr.bf16.mxu0 0
          %1503 = vmatpush1.bf16.msra.mxu0 0
          %1504 = vmatprep.subr.bf16.mxu0 0
          %1505 = vmatpush1.bf16.msra.mxu0 0
          %1506 = vmatprep.subr.bf16.mxu0 0
          %1507 = vmatpush1.bf16.msra.mxu0 0
          %1508 = vmatprep.subr.bf16.mxu0 0
          %1509 = vmatpush1.bf16.msra.mxu0 0
          %1510 = vmatprep.subr.bf16.mxu0 0
          %1511 = vmatpush1.bf16.msra.mxu0 0
          %1512 = vmatprep.subr.bf16.mxu0 0
          %1513 = vmatpush1.bf16.msra.mxu0 0
          %1514 = vmatprep.subr.bf16.mxu0 0
          %1515 = vmatpush1.bf16.msra.mxu0 0
          %1516 = vmatprep.subr.bf16.mxu0 0
          %1517 = vmatpush1.bf16.msra.mxu0 0
          %1518 = vmatprep.mubr.bf16.mxu0 0
          %1519 = vmatmul.mubr.bf16.gmra.mrb[0].mxu0 %v1230
          %v1520 = vpop.f32.mrb[0].mxu0
          %v1521 = vadd.f32 %v1436, %v1520
          %v1522 = vpop.f32.mrb[0].mxu0
          %v1523 = vadd.f32 %v1440, %v1522
          %v1524 = vpop.f32.mrb[0].mxu0
          %v1525 = vpop.f32.mrb[0].mxu0
          %1526 = vdwg.mxu0
          %1527 = vst [vmem:[#allocation17] sm:$0x1] %v1480
          %1528 = vst [vmem:[#allocation17 + $0x1] sm:$0x1] %v1482
          %1529 = vst [vmem:[#allocation17 + $0x2] sm:$0x1] %v1521
          %1530 = vst [vmem:[#allocation17 + $0x3] sm:$0x1] %v1523
        $region100: #{tpu_custom_call.1} parent=59 // pred_fallthru
          _
        // Predicated region
        $region101: #{tpu_custom_call.1} parent=59 // pred_check
          %p1531 = pneg %p291
        $region102: #{tpu_custom_call.1} parent=59 // pred_check_branch
          %1533 = sbr.rel (%p1531) target = $region104
        $region103: #{tpu_custom_call.1} parent=59 // pred_region
          %s1535 = ssub.s32 64, 64
          %1536 = vsyncadd [#allocation5], %s1535
          %s1538 = sshll.u32 [#allocation17], 4
          %s1539 = int_to_ptr.vmem [resolvable:$true] %s1538
          %1541 = dma.vmem_to_hbm [thread:$0]  %s1539, 64, %s10, [#allocation5]
        $region104: #{tpu_custom_call.1} parent=59 // pred_fallthru
          _
        // Predicated region
        $region105: #{tpu_custom_call.1} parent=59 // pred_check
          %p1542 = pneg %p291
        $region106: #{tpu_custom_call.1} parent=59 // pred_check_branch
          %1544 = sbr.rel (%p1542) target = $region108
        $region107: #{tpu_custom_call.1} parent=59 // pred_region
          %1545 = dma.done [#allocation5], 64
        $region108: #{tpu_custom_call.1} parent=59 // pred_fallthru
          _
      $region60: #{tpu_custom_call.1} parent=5 // pred_fallthru
        _
      %p1546 = scmp.le.s32.totalorder 2, %s28
      // Predicated region
      $region109: #{tpu_custom_call.1} parent=5 // pred_check
        %p1547 = pneg %p1546
      $region110: #{tpu_custom_call.1} parent=5 // pred_check_branch
        %1549 = sbr.rel (%p1547) target = $region112
      $region111: #{tpu_custom_call.1} parent=5 // pred_region
        %s1550 = ssub.s32 %s28, 2
      $region112: #{tpu_custom_call.1} parent=5 // pred_fallthru
        _
    $region6: #{tpu_custom_call.1} parent=1 // loop_footer
      %s32 = sadd.s32 1, %s28
    $region7: #{tpu_custom_call.1} parent=1 // loop_footer_branch
      %27 = sbr.rel target = $region3
    $region8: #{tpu_custom_call.1} parent=1 // loop_exit
      _
    %1551 = vsyncpa [#allocation4], 1
    %s1552 = scalar_lea.sflag [#allocation4], 1
    %1553 = vsyncpa %s1552, 1
    %1554 = vsyncpa [#allocation7], 1
    %s1555 = scalar_lea.sflag [#allocation7], 1
    %1556 = vsyncpa %s1555, 1
    %1557 = vsyncpa [#allocation10], 1
    %s1558 = scalar_lea.sflag [#allocation10], 1
    %1559 = vsyncpa %s1558, 1
    %1560 = vsyncpa [#allocation13], 1
    %s1561 = scalar_lea.sflag [#allocation13], 1
    %1562 = vsyncpa %s1561, 1
    %1563 = vsyncpa [#allocation16], 1
    %1564 = vsyncpa [#allocation5], 1
    %s1565 = scalar_lea.sflag [#allocation5], 1
    %1566 = vsyncpa %s1565, 1

</llo_original>
